<compile_context>
chip_gen: v6e
topology: v6e:2x2x1
jax: 0.10.0
libtpu: 0.0.40
codegen_flags: <defaults>
</compile_context>

<pallas_src>
import jax
import jax.numpy as jnp
from jax import lax
from jax.experimental import pallas as pl
from jax.experimental.pallas import tpu as pltpu


def _bottleneck_kernel(x_ref, w1_ref, b1_ref, w2_ref, b2_ref, w3_ref, b3_ref,
                       out_ref, h1_scr):
    t = pl.program_id(1)
    nt = pl.num_programs(1)

    W, Cp = x_ref.shape[2], x_ref.shape[3]
    TH = out_ref.shape[1]
    wp = w1_ref.shape[1]
    Op = w3_ref.shape[1]

    # Padded-row coordinates: image row r lives at padded row r+1; tile t needs
    # padded rows [t*TH, t*TH + TH + 1] (TH+2 rows incl. the 3x3 halo).
    r0 = pl.multiple_of(t * TH, TH)

    # ---- conv1 (1x1, BN scale folded into w1) + bias + relu, TH+2 halo rows --
    xe = x_ref[0, pl.ds(r0, TH + 2), :, :].reshape((TH + 2) * W, Cp)   # bf16
    h1 = jnp.dot(xe, w1_ref[...], preferred_element_type=jnp.float32)
    h1 = jnp.maximum(h1 + b1_ref[...], 0.0)
    h1_scr[...] = h1.reshape(TH + 2, W, wp)

    # The conv2 SAME-padding rows must be zeros (not relu(b1) from the zero x
    # rows): overwrite them at the image boundaries only.
    @pl.when(t == 0)
    def _():
        h1_scr[0, :, :] = jnp.zeros((W, wp), jnp.float32)

    @pl.when(t == nt - 1)
    def _():
        h1_scr[TH + 1, :, :] = jnp.zeros((W, wp), jnp.float32)

    ext = h1_scr[...]                                   # (TH+2, W, wp) f32

    # ---- conv2 (3x3, stride 1, pad 1): im2col slab + one big-K MXU matmul ---
    col = lax.broadcasted_iota(jnp.int32, (1, W, wp), 1)
    keep_l = (col != 0).astype(jnp.float32)             # kill wrapped col 0
    keep_r = (col != W - 1).astype(jnp.float32)         # kill wrapped col W-1
    ext_m = (pltpu.roll(ext, 1, 1) * keep_l).astype(jnp.bfloat16)   # col j-1
    ext_c = ext.astype(jnp.bfloat16)                                 # col j
    ext_p = (pltpu.roll(ext, W - 1, 1) * keep_r).astype(jnp.bfloat16)  # col j+1

    variants = (ext_m, ext_c, ext_p)                    # dx = 0, 1, 2
    taps = []
    for dy in range(3):
        for dx in range(3):
            taps.append(variants[dx][dy:dy + TH].reshape(TH * W, wp))
    # bf16 (TH*W, 9*wp) slab; K-order (ky, kx, cin) matches w2.reshape(9*wp, wp)
    slab = jnp.concatenate(taps, axis=-1)

    h2 = jnp.dot(slab, w2_ref[...], preferred_element_type=jnp.float32)
    h2 = jnp.maximum(h2 + b2_ref[...], 0.0)

    # ---- conv3 (1x1) + bias, residual add (f32), relu ------------------------
    h3 = jnp.dot(h2.astype(jnp.bfloat16), w3_ref[...],
                 preferred_element_type=jnp.float32)
    h3 = h3 + b3_ref[...]

    xid = x_ref[0, pl.ds(r0 + 1, TH), :, :].astype(jnp.float32)
    xid = xid.reshape(TH * W, Cp)
    out_ref[0] = jnp.maximum(h3 + xid, 0.0).reshape(TH, W, Op)


def _round_up(v, m):
    return (v + m - 1) // m * m


def _pick_tile_h(H, W, Cp, wp, Op, max_th=32, budget_bytes=12 * 1024 * 1024):
    """Largest divisor of H that keeps the per-tile working set in budget."""
    per_row = W * (9 * wp * 2          # bf16 im2col slab
                   + wp * 4            # conv1 scratch row (f32)
                   + wp * 4            # h2 (f32)
                   + (Op + Cp) * 4     # h3 + residual (f32)
                   + Op * 4)           # output tile row (f32)
    cap = max(1, min(max_th, budget_bytes // max(per_row, 1), H))
    for th in range(cap, 0, -1):
        if H % th == 0:
            return th
    return 1


def _bottleneck_pallas_impl(x_nchw, params):
    """x_nchw: (N, C, H, W) float32. Returns (N, C, H, W) float32."""
    (w1, s1, b1, w2, s2, b2, w3, s3, b3) = params
    N, C, H, W = x_nchw.shape
    width = w1.shape[1]
    Cout = w3.shape[1]
    assert Cout == C, "no downsample: inplanes must equal planes * expansion"

    LANE = 128
    Cp = _round_up(C, LANE)
    wp = _round_up(width, LANE)
    Op = _round_up(Cout, LANE)
    TH = _pick_tile_h(H, W, Cp, wp, Op)

    # NHWC, one zero halo row top/bottom (conv2 SAME padding), channels padded
    # to a lane multiple, cast to bf16 (halves HBM traffic + resident VMEM).
    x_nhwc = jnp.transpose(x_nchw, (0, 2, 3, 1))
    x_pad = jnp.pad(x_nhwc, ((0, 0), (1, 1), (0, 0), (0, Cp - C)))
    x_pad = x_pad.astype(jnp.bfloat16)

    # Fold BN scales into the conv weights' output-channel axes (inference).
    w1f = w1 * s1                                   # (C, width)
    w2f = w2 * s2.reshape(1, 1, 1, width)           # (3, 3, width, width)
    w3f = w3 * s3                                   # (width, Cout)

    w1p = jnp.pad(w1f, ((0, Cp - C), (0, wp - width))).astype(jnp.bfloat16)
    w2p = jnp.pad(w2f, ((0, 0), (0, 0), (0, wp - width), (0, wp - width)))
    w2p = w2p.reshape(9 * wp, wp).astype(jnp.bfloat16)   # (ky,kx,cin) row-major
    w3p = jnp.pad(w3f, ((0, wp - width), (0, Op - Cout))).astype(jnp.bfloat16)

    def pad_vec(v, c):
        return jnp.pad(v, ((0, 0), (0, c - v.shape[1])))

    b1p, b2p, b3p = pad_vec(b1, wp), pad_vec(b2, wp), pad_vec(b3, Op)

    def const_spec(arr):
        nd = arr.ndim
        return pl.BlockSpec(arr.shape, lambda n, t, _nd=nd: (0,) * _nd)

    grid = (N, H // TH)

    # VMEM budget from actual buffers (double-buffered image + output tile,
    # weights, scratch, and tile intermediates), clamped to fit every chip gen.
    vmem_est = (2 * (H + 2) * W * Cp * 2                 # resident bf16 image x2
                + 2 * TH * W * Op * 4                    # output tile x2
                + 2 * (Cp * wp + 9 * wp * wp + wp * Op) * 2   # bf16 weights x2
                + (TH + 2) * W * wp * 4                  # conv1 scratch
                + TH * W * 9 * wp * 2 * 2                # im2col slab + taps
                + TH * W * (wp + Op + Cp) * 4 * 2)       # h2/h3/xid headroom
    vmem_limit = int(min(max(vmem_est * 2, 24 * 1024 * 1024),
                         64 * 1024 * 1024))

    out_p = pl.pallas_call(
        _bottleneck_kernel,
        out_shape=jax.ShapeDtypeStruct((N, H, W, Op), jnp.float32),
        grid_spec=pltpu.PrefetchScalarGridSpec(
            num_scalar_prefetch=0,
            grid=grid,
            in_specs=[
                # Full padded image per n; block index constant over t -> resident.
                pl.BlockSpec((1, H + 2, W, Cp), lambda n, t: (n, 0, 0, 0)),
                const_spec(w1p), const_spec(b1p),
                const_spec(w2p), const_spec(b2p),
                const_spec(w3p), const_spec(b3p),
            ],
            out_specs=pl.BlockSpec((1, TH, W, Op), lambda n, t: (n, t, 0, 0)),
            scratch_shapes=[pltpu.VMEM((TH + 2, W, wp), jnp.float32)],
        ),
        compiler_params=pltpu.CompilerParams(
            # No cross-step dependency (conv1 is per-tile) -> both axes parallel.
            dimension_semantics=("parallel", "parallel"),
            vmem_limit_bytes=vmem_limit),
    )(x_pad, w1p, b1p, w2p, b2p, w3p, b3p)

    return jnp.transpose(out_p[..., :Cout], (0, 3, 1, 2))   # back to NCHW


bottleneck_pallas = jax.jit(_bottleneck_pallas_impl)


def _fold_bn(gamma, beta, mean, var, eps=1e-5):
    scale = gamma / jnp.sqrt(var + eps)
    bias = beta - mean * scale
    return scale.reshape(1, -1), bias.reshape(1, -1)


def make_params(key, inplanes, planes, groups=1, base_width=64):
    """Deterministic synthetic parameters matching Bottleneck.__init__ shapes."""
    expansion = 4
    width = int(planes * (base_width / 64.0)) * groups
    out_ch = planes * expansion
    keys = jax.random.split(key, 6)

    w1 = 0.1 * jax.random.normal(keys[0], (inplanes, width), jnp.float32)
    w2 = 0.1 * jax.random.normal(keys[1], (3, 3, width, width), jnp.float32)
    w3 = 0.1 * jax.random.normal(keys[2], (width, out_ch), jnp.float32)

    def bn_params(k, c):
        kg, kb, km, kv = jax.random.split(k, 4)
        gamma = 1.0 + 0.1 * jax.random.normal(kg, (c,), jnp.float32)
        beta = 0.1 * jax.random.normal(kb, (c,), jnp.float32)
        mean = 0.1 * jax.random.normal(km, (c,), jnp.float32)
        var = 1.0 + 0.1 * jnp.abs(jax.random.normal(kv, (c,), jnp.float32))
        return _fold_bn(gamma, beta, mean, var)

    s1, b1 = bn_params(keys[3], width)
    s2, b2 = bn_params(keys[4], width)
    s3, b3 = bn_params(keys[5], out_ch)
    return (w1, s1, b1, w2, s2, b2, w3, s3, b3)


def bottleneck_reference(x_nchw, params):
    """Plain-JAX f32 reference (lax convs) for the correctness check."""
    (w1, s1, b1, w2, s2, b2, w3, s3, b3) = params
    x = jnp.transpose(x_nchw, (0, 2, 3, 1))   # NHWC
    h = jnp.maximum(jnp.einsum('nhwc,cd->nhwd', x, w1) * s1 + b1, 0.0)
    h = lax.conv_general_dilated(h, w2, window_strides=(1, 1), padding='SAME',
                                 dimension_numbers=('NHWC', 'HWIO', 'NHWC'))
    h = jnp.maximum(h * s2 + b2, 0.0)
    h = jnp.einsum('nhwc,cd->nhwd', h, w3) * s3 + b3
    return jnp.transpose(jnp.maximum(h + x, 0.0), (0, 3, 1, 2))


if __name__ == "__main__":
    key = jax.random.PRNGKey(0)
    k_x, k_p = jax.random.split(key)

    # inplanes == planes * expansion so downsample=None (identity residual).
    N, inplanes, planes, H, W = 2, 16, 4, 16, 16
    x = jax.random.normal(k_x, (N, inplanes, H, W), jnp.float32)
    params = make_params(k_p, inplanes, planes)

    out = jax.block_until_ready(bottleneck_pallas(x, params))
    ref = bottleneck_reference(x, params)

    assert out.shape == (N, inplanes, H, W)
    err = float(jnp.max(jnp.abs(out - ref)))
    # bf16 matmul operands (and bf16 input) with f32 accumulation -> loose tol.
    assert err < 5e-2, f"mismatch vs JAX reference: max abs err = {err}"

    print("KERNEL_OK")
</pallas_src>

<mosaic_0001>
module attributes {stable_mosaic.version = 11 : i64} {
  func.func @_bottleneck_kernel(%arg0: i32, %arg1: i32, %arg2: memref<1x18x16x128xbf16, #tpu.memory_space<vmem>>, %arg3: memref<128x128xbf16, #tpu.memory_space<vmem>>, %arg4: memref<1x128xf32, #tpu.memory_space<vmem>>, %arg5: memref<1152x128xbf16, #tpu.memory_space<vmem>>, %arg6: memref<1x128xf32, #tpu.memory_space<vmem>>, %arg7: memref<128x128xbf16, #tpu.memory_space<vmem>>, %arg8: memref<1x128xf32, #tpu.memory_space<vmem>>, %arg9: memref<1x16x16x128xf32, #tpu.memory_space<vmem>>, %arg10: memref<18x16x128xf32, #tpu.memory_space<vmem>>) attributes {dimension_semantics = [#tpu.dimension_semantics<parallel>, #tpu.dimension_semantics<parallel>], iteration_bounds = array<i64: 2, 1>, scalar_prefetch = 0 : i64, scratch_operands = 1 : i64, tpu.core_type = #tpu.core_type<tc>, window_params = [{transform_indices = @transform_0, window_bounds = array<i64: 1, 18, 16, 128>}, {pipeline_mode = #tpu.pipeline_mode<synchronous>, transform_indices = @transform_1, window_bounds = array<i64: 128, 128>}, {pipeline_mode = #tpu.pipeline_mode<synchronous>, transform_indices = @transform_2, window_bounds = array<i64: 1, 128>}, {pipeline_mode = #tpu.pipeline_mode<synchronous>, transform_indices = @transform_3, window_bounds = array<i64: 1152, 128>}, {pipeline_mode = #tpu.pipeline_mode<synchronous>, transform_indices = @transform_4, window_bounds = array<i64: 1, 128>}, {pipeline_mode = #tpu.pipeline_mode<synchronous>, transform_indices = @transform_5, window_bounds = array<i64: 128, 128>}, {pipeline_mode = #tpu.pipeline_mode<synchronous>, transform_indices = @transform_6, window_bounds = array<i64: 1, 128>}, {transform_indices = @transform_7, window_bounds = array<i64: 1, 16, 16, 128>}]} {
    %c16_i32 = arith.constant 16 : i32
    %0 = arith.muli %arg1, %c16_i32 : i32
    %1 = tpu.assume_multiple %0, 16 : i32
    %c0 = arith.constant 0 : index
    %2 = arith.index_cast %1 : i32 to index
    %c0_0 = arith.constant 0 : index
    %c0_1 = arith.constant 0 : index
    %3 = vector.load %arg2[%c0, %2, %c0_0, %c0_1] : memref<1x18x16x128xbf16, #tpu.memory_space<vmem>>, vector<1x18x16x128xbf16>
    %4 = vector.shape_cast %3 : vector<1x18x16x128xbf16> to vector<18x16x128xbf16>
    %5 = vector.shape_cast %4 : vector<18x16x128xbf16> to vector<288x128xbf16>
    %c0_2 = arith.constant 0 : index
    %c0_3 = arith.constant 0 : index
    %6 = vector.load %arg3[%c0_2, %c0_3] : memref<128x128xbf16, #tpu.memory_space<vmem>>, vector<128x128xbf16>
    %cst = arith.constant dense<0.000000e+00> : vector<288x128xf32>
    %7 = tpu.matmul %5, %6, %cst {dimension_numbers = #tpu.dot_dimension_numbers<[1], [0], [0], [1], [0, 0, 1, 1], [], []>} : vector<288x128xbf16>, vector<128x128xbf16>, vector<288x128xf32> -> vector<288x128xf32>
    %c0_4 = arith.constant 0 : index
    %c0_5 = arith.constant 0 : index
    %8 = vector.load %arg4[%c0_4, %c0_5] : memref<1x128xf32, #tpu.memory_space<vmem>>, vector<1x128xf32>
    %9 = vector.broadcast %8 : vector<1x128xf32> to vector<288x128xf32>
    %10 = arith.addf %7, %9 : vector<288x128xf32>
    %cst_6 = arith.constant 0.000000e+00 : f32
    %11 = vector.broadcast %cst_6 : f32 to vector<288x128xf32>
    %12 = arith.maximumf %10, %11 : vector<288x128xf32>
    %13 = vector.shape_cast %12 : vector<288x128xf32> to vector<18x16x128xf32>
    %c0_7 = arith.constant 0 : index
    %c0_8 = arith.constant 0 : index
    %c0_9 = arith.constant 0 : index
    %14 = vector.load %arg10[%c0_7, %c0_8, %c0_9] : memref<18x16x128xf32, #tpu.memory_space<vmem>>, vector<18x16x128xf32>
    tpu.vector_store %arg10[%c0_7, %c0_8, %c0_9], %13 {strides = array<i32>} : memref<18x16x128xf32, #tpu.memory_space<vmem>>, vector<18x16x128xf32>,
    %c0_i32 = arith.constant 0 : i32
    %15 = arith.cmpi eq, %arg1, %c0_i32 : i32
    %16 = arith.extui %15 : i1 to i32
    %c0_i32_10 = arith.constant 0 : i32
    %17 = arith.cmpi ne, %16, %c0_i32_10 : i32
    scf.if %17 {
      %cst_38 = arith.constant 0.000000e+00 : f32
      %85 = vector.broadcast %cst_38 : f32 to vector<16x128xf32>
      %c0_39 = arith.constant 0 : index
      %c0_40 = arith.constant 0 : index
      %c0_41 = arith.constant 0 : index
      %86 = vector.load %arg10[%c0_39, %c0_40, %c0_41] : memref<18x16x128xf32, #tpu.memory_space<vmem>>, vector<1x16x128xf32>
      %87 = vector.shape_cast %86 : vector<1x16x128xf32> to vector<16x128xf32>
      %88 = vector.shape_cast %85 : vector<16x128xf32> to vector<1x16x128xf32>
      tpu.vector_store %arg10[%c0_39, %c0_40, %c0_41], %88 {strides = array<i32>} : memref<18x16x128xf32, #tpu.memory_space<vmem>>, vector<1x16x128xf32>,
    } else {
    }
    %c0_i32_11 = arith.constant 0 : i32
    %18 = arith.cmpi eq, %arg1, %c0_i32_11 : i32
    %19 = arith.extui %18 : i1 to i32
    %c0_i32_12 = arith.constant 0 : i32
    %20 = arith.cmpi ne, %19, %c0_i32_12 : i32
    scf.if %20 {
      %cst_38 = arith.constant 0.000000e+00 : f32
      %85 = vector.broadcast %cst_38 : f32 to vector<16x128xf32>
      %c17 = arith.constant 17 : index
      %c0_39 = arith.constant 0 : index
      %c0_40 = arith.constant 0 : index
      %86 = vector.load %arg10[%c17, %c0_39, %c0_40] : memref<18x16x128xf32, #tpu.memory_space<vmem>>, vector<1x16x128xf32>
      %87 = vector.shape_cast %86 : vector<1x16x128xf32> to vector<16x128xf32>
      %88 = vector.shape_cast %85 : vector<16x128xf32> to vector<1x16x128xf32>
      tpu.vector_store %arg10[%c17, %c0_39, %c0_40], %88 {strides = array<i32>} : memref<18x16x128xf32, #tpu.memory_space<vmem>>, vector<1x16x128xf32>,
    } else {
    }
    %c0_13 = arith.constant 0 : index
    %c0_14 = arith.constant 0 : index
    %c0_15 = arith.constant 0 : index
    %21 = vector.load %arg10[%c0_13, %c0_14, %c0_15] : memref<18x16x128xf32, #tpu.memory_space<vmem>>, vector<18x16x128xf32>
    %22 = tpu.iota {dimensions = array<i32: 1>} : vector<1x16x128xi32>
    %c0_i32_16 = arith.constant 0 : i32
    %23 = vector.broadcast %c0_i32_16 : i32 to vector<1x16x128xi32>
    %24 = arith.cmpi ne, %22, %23 : vector<1x16x128xi32>
    %25 = arith.extui %24 : vector<1x16x128xi1> to vector<1x16x128xi32>
    %26 = arith.sitofp %25 : vector<1x16x128xi32> to vector<1x16x128xf32>
    %c15_i32 = arith.constant 15 : i32
    %27 = vector.broadcast %c15_i32 : i32 to vector<1x16x128xi32>
    %28 = arith.cmpi ne, %22, %27 : vector<1x16x128xi32>
    %29 = arith.extui %28 : vector<1x16x128xi1> to vector<1x16x128xi32>
    %30 = arith.sitofp %29 : vector<1x16x128xi32> to vector<1x16x128xf32>
    %c1_i32 = arith.constant 1 : i32
    %31 = tpu.dynamic_rotate %21 by %c1_i32 dim 1 : vector<18x16x128xf32>, i32 -> vector<18x16x128xf32>
    %32 = vector.broadcast %26 : vector<1x16x128xf32> to vector<18x16x128xf32>
    %33 = arith.mulf %31, %32 : vector<18x16x128xf32>
    %34 = arith.truncf %33 : vector<18x16x128xf32> to vector<18x16x128xbf16>
    %35 = arith.truncf %21 : vector<18x16x128xf32> to vector<18x16x128xbf16>
    %c15_i32_17 = arith.constant 15 : i32
    %36 = tpu.dynamic_rotate %21 by %c15_i32_17 dim 1 : vector<18x16x128xf32>, i32 -> vector<18x16x128xf32>
    %37 = vector.broadcast %30 : vector<1x16x128xf32> to vector<18x16x128xf32>
    %38 = arith.mulf %36, %37 : vector<18x16x128xf32>
    %39 = arith.truncf %38 : vector<18x16x128xf32> to vector<18x16x128xbf16>
    %40 = vector.extract_strided_slice %34 {offsets = [0, 0, 0], sizes = [16, 16, 128], strides = [1, 1, 1]} : vector<18x16x128xbf16> to vector<16x16x128xbf16>
    %41 = vector.shape_cast %40 : vector<16x16x128xbf16> to vector<256x128xbf16>
    %42 = vector.extract_strided_slice %35 {offsets = [0, 0, 0], sizes = [16, 16, 128], strides = [1, 1, 1]} : vector<18x16x128xbf16> to vector<16x16x128xbf16>
    %43 = vector.shape_cast %42 : vector<16x16x128xbf16> to vector<256x128xbf16>
    %44 = vector.extract_strided_slice %39 {offsets = [0, 0, 0], sizes = [16, 16, 128], strides = [1, 1, 1]} : vector<18x16x128xbf16> to vector<16x16x128xbf16>
    %45 = vector.shape_cast %44 : vector<16x16x128xbf16> to vector<256x128xbf16>
    %46 = vector.extract_strided_slice %34 {offsets = [1, 0, 0], sizes = [16, 16, 128], strides = [1, 1, 1]} : vector<18x16x128xbf16> to vector<16x16x128xbf16>
    %47 = vector.shape_cast %46 : vector<16x16x128xbf16> to vector<256x128xbf16>
    %48 = vector.extract_strided_slice %35 {offsets = [1, 0, 0], sizes = [16, 16, 128], strides = [1, 1, 1]} : vector<18x16x128xbf16> to vector<16x16x128xbf16>
    %49 = vector.shape_cast %48 : vector<16x16x128xbf16> to vector<256x128xbf16>
    %50 = vector.extract_strided_slice %39 {offsets = [1, 0, 0], sizes = [16, 16, 128], strides = [1, 1, 1]} : vector<18x16x128xbf16> to vector<16x16x128xbf16>
    %51 = vector.shape_cast %50 : vector<16x16x128xbf16> to vector<256x128xbf16>
    %52 = vector.extract_strided_slice %34 {offsets = [2, 0, 0], sizes = [16, 16, 128], strides = [1, 1, 1]} : vector<18x16x128xbf16> to vector<16x16x128xbf16>
    %53 = vector.shape_cast %52 : vector<16x16x128xbf16> to vector<256x128xbf16>
    %54 = vector.extract_strided_slice %35 {offsets = [2, 0, 0], sizes = [16, 16, 128], strides = [1, 1, 1]} : vector<18x16x128xbf16> to vector<16x16x128xbf16>
    %55 = vector.shape_cast %54 : vector<16x16x128xbf16> to vector<256x128xbf16>
    %56 = vector.extract_strided_slice %39 {offsets = [2, 0, 0], sizes = [16, 16, 128], strides = [1, 1, 1]} : vector<18x16x128xbf16> to vector<16x16x128xbf16>
    %57 = vector.shape_cast %56 : vector<16x16x128xbf16> to vector<256x128xbf16>
    %58 = tpu.concatenate %41, %43, %45, %47, %49, %51, %53, %55, %57 in 1 : vector<256x128xbf16>, vector<256x128xbf16>, vector<256x128xbf16>, vector<256x128xbf16>, vector<256x128xbf16>, vector<256x128xbf16>, vector<256x128xbf16>, vector<256x128xbf16>, vector<256x128xbf16> -> vector<256x1152xbf16>
    %c0_18 = arith.constant 0 : index
    %c0_19 = arith.constant 0 : index
    %59 = vector.load %arg5[%c0_18, %c0_19] : memref<1152x128xbf16, #tpu.memory_space<vmem>>, vector<1152x128xbf16>
    %cst_20 = arith.constant dense<0.000000e+00> : vector<256x128xf32>
    %60 = tpu.matmul %58, %59, %cst_20 {dimension_numbers = #tpu.dot_dimension_numbers<[1], [0], [0], [1], [0, 0, 1, 1], [], []>} : vector<256x1152xbf16>, vector<1152x128xbf16>, vector<256x128xf32> -> vector<256x128xf32>
    %c0_21 = arith.constant 0 : index
    %c0_22 = arith.constant 0 : index
    %61 = vector.load %arg6[%c0_21, %c0_22] : memref<1x128xf32, #tpu.memory_space<vmem>>, vector<1x128xf32>
    %62 = vector.broadcast %61 : vector<1x128xf32> to vector<256x128xf32>
    %63 = arith.addf %60, %62 : vector<256x128xf32>
    %cst_23 = arith.constant 0.000000e+00 : f32
    %64 = vector.broadcast %cst_23 : f32 to vector<256x128xf32>
    %65 = arith.maximumf %63, %64 : vector<256x128xf32>
    %66 = arith.truncf %65 : vector<256x128xf32> to vector<256x128xbf16>
    %c0_24 = arith.constant 0 : index
    %c0_25 = arith.constant 0 : index
    %67 = vector.load %arg7[%c0_24, %c0_25] : memref<128x128xbf16, #tpu.memory_space<vmem>>, vector<128x128xbf16>
    %cst_26 = arith.constant dense<0.000000e+00> : vector<256x128xf32>
    %68 = tpu.matmul %66, %67, %cst_26 {dimension_numbers = #tpu.dot_dimension_numbers<[1], [0], [0], [1], [0, 0, 1, 1], [], []>} : vector<256x128xbf16>, vector<128x128xbf16>, vector<256x128xf32> -> vector<256x128xf32>
    %c0_27 = arith.constant 0 : index
    %c0_28 = arith.constant 0 : index
    %69 = vector.load %arg8[%c0_27, %c0_28] : memref<1x128xf32, #tpu.memory_space<vmem>>, vector<1x128xf32>
    %70 = vector.broadcast %69 : vector<1x128xf32> to vector<256x128xf32>
    %71 = arith.addf %68, %70 : vector<256x128xf32>
    %c1_i32_29 = arith.constant 1 : i32
    %72 = arith.addi %1, %c1_i32_29 : i32
    %c0_30 = arith.constant 0 : index
    %73 = arith.index_cast %72 : i32 to index
    %c0_31 = arith.constant 0 : index
    %c0_32 = arith.constant 0 : index
    %74 = vector.load %arg2[%c0_30, %73, %c0_31, %c0_32] : memref<1x18x16x128xbf16, #tpu.memory_space<vmem>>, vector<1x16x16x128xbf16>
    %75 = vector.shape_cast %74 : vector<1x16x16x128xbf16> to vector<16x16x128xbf16>
    %76 = arith.extf %75 : vector<16x16x128xbf16> to vector<16x16x128xf32>
    %77 = vector.shape_cast %76 : vector<16x16x128xf32> to vector<256x128xf32>
    %78 = arith.addf %71, %77 : vector<256x128xf32>
    %cst_33 = arith.constant 0.000000e+00 : f32
    %79 = vector.broadcast %cst_33 : f32 to vector<256x128xf32>
    %80 = arith.maximumf %78, %79 : vector<256x128xf32>
    %81 = vector.shape_cast %80 : vector<256x128xf32> to vector<16x16x128xf32>
    %c0_34 = arith.constant 0 : index
    %c0_35 = arith.constant 0 : index
    %c0_36 = arith.constant 0 : index
    %c0_37 = arith.constant 0 : index
    %82 = vector.load %arg9[%c0_34, %c0_35, %c0_36, %c0_37] : memref<1x16x16x128xf32, #tpu.memory_space<vmem>>, vector<1x16x16x128xf32>
    %83 = vector.shape_cast %82 : vector<1x16x16x128xf32> to vector<16x16x128xf32>
    %84 = vector.shape_cast %81 : vector<16x16x128xf32> to vector<1x16x16x128xf32>
    tpu.vector_store %arg9[%c0_34, %c0_35, %c0_36, %c0_37], %84 {strides = array<i32>} : memref<1x16x16x128xf32, #tpu.memory_space<vmem>>, vector<1x16x16x128xf32>,
    return
  }
  func.func @transform_0(%arg0: i32, %arg1: i32) -> (i32, i32, i32, i32) {
    %c0_i32 = arith.constant 0 : i32
    %c0_i32_0 = arith.constant 0 : i32
    %c0_i32_1 = arith.constant 0 : i32
    %c0_i32_2 = arith.constant 0 : i32
    return %arg0, %c0_i32, %c0_i32_0, %c0_i32_1 : i32, i32, i32, i32
  }
  func.func @transform_1(%arg0: i32, %arg1: i32) -> (i32, i32) {
    %c0_i32 = arith.constant 0 : i32
    %c0_i32_0 = arith.constant 0 : i32
    %c0_i32_1 = arith.constant 0 : i32
    return %c0_i32, %c0_i32_0 : i32, i32
  }
  func.func @transform_2(%arg0: i32, %arg1: i32) -> (i32, i32) {
    %c0_i32 = arith.constant 0 : i32
    %c0_i32_0 = arith.constant 0 : i32
    %c0_i32_1 = arith.constant 0 : i32
    return %c0_i32, %c0_i32_0 : i32, i32
  }
  func.func @transform_3(%arg0: i32, %arg1: i32) -> (i32, i32) {
    %c0_i32 = arith.constant 0 : i32
    %c0_i32_0 = arith.constant 0 : i32
    %c0_i32_1 = arith.constant 0 : i32
    return %c0_i32, %c0_i32_0 : i32, i32
  }
  func.func @transform_4(%arg0: i32, %arg1: i32) -> (i32, i32) {
    %c0_i32 = arith.constant 0 : i32
    %c0_i32_0 = arith.constant 0 : i32
    %c0_i32_1 = arith.constant 0 : i32
    return %c0_i32, %c0_i32_0 : i32, i32
  }
  func.func @transform_5(%arg0: i32, %arg1: i32) -> (i32, i32) {
    %c0_i32 = arith.constant 0 : i32
    %c0_i32_0 = arith.constant 0 : i32
    %c0_i32_1 = arith.constant 0 : i32
    return %c0_i32, %c0_i32_0 : i32, i32
  }
  func.func @transform_6(%arg0: i32, %arg1: i32) -> (i32, i32) {
    %c0_i32 = arith.constant 0 : i32
    %c0_i32_0 = arith.constant 0 : i32
    %c0_i32_1 = arith.constant 0 : i32
    return %c0_i32, %c0_i32_0 : i32, i32
  }
  func.func @transform_7(%arg0: i32, %arg1: i32) -> (i32, i32, i32, i32) {
    %c0_i32 = arith.constant 0 : i32
    %c0_i32_0 = arith.constant 0 : i32
    %c0_i32_1 = arith.constant 0 : i32
    return %arg0, %arg1, %c0_i32, %c0_i32_0 : i32, i32, i32, i32
  }
}

</mosaic_0001>

<llo_original>
// kernel: _bottleneck_pallas_impl.1
$region0: #{_bottleneck_pallas_impl.1}
  #allocation0 [shape = 'u32[]', space=smem, size = 0x4, offset = 0x4, fixed_abs, tag = 'smem constant byte address 0x4 - core index']
  #allocation1 [shape = 'u32[144,128]{1,0:T(1,128)}', space=vmem, size = 0x12000, scoped, tag = 'internal scratch']
  #allocation2 [shape = 'f32[18,16,128]{2,1,0:T(8,128)}', space=vmem, size = 0x24000, scoped, tag = 'scratch operand']
  %s0 = inlined_call_operand.vmem [shape: bf16[2,18,16,128], index: 0, kind: input, shape index: {}]
  %s1 = inlined_call_operand.vmem [shape: bf16[128,128], index: 1, kind: input, shape index: {}]
  %s2 = inlined_call_operand.vmem [shape: f32[1,128], index: 2, kind: input, shape index: {}]
  %s3 = inlined_call_operand.vmem [shape: bf16[1152,128], index: 3, kind: input, shape index: {}]
  %s4 = inlined_call_operand.vmem [shape: f32[1,128], index: 4, kind: input, shape index: {}]
  %s5 = inlined_call_operand.vmem [shape: bf16[128,128], index: 5, kind: input, shape index: {}]
  %s6 = inlined_call_operand.vmem [shape: f32[1,128], index: 6, kind: input, shape index: {}]
  %s7 = inlined_call_operand.vmem [shape: f32[2,16,16,128], index: 7, kind: output, shape index: {}]
  %s8 = sld [smem:[#allocation0]]
  $region65: #{_bottleneck_pallas_impl.1} parent=0
    _
  %s10 = ssub.s32 1, %s8
  %s11 = scalar_select 0, %s10, %s8
  loop: start=0, step=1, limit=4
  $region2: #{_bottleneck_pallas_impl.1} parent=0 // loop_pre_header
    _
  $region3: #{_bottleneck_pallas_impl.1} parent=0 // loop_header
    %s13 = sphi 0, %s17
    %p14 = scmp.ge.s32.totalorder %s13, 4
    %s20 = sphi 0, %s32
    %s21 = sphi 0, %s28
    %s22 = sphi 0, %s20
    %s23 = sphi 0, %s21
    %s24 = sphi 0, %s22
    %s25 = sphi 0, %s23
    %s35 = sphi 0, %s37
    %s38 = sphi 0, %s35
    %s39 = sphi 0, %s38
    %s55 = sphi 0, %s39
    %s59 = sphi 0, %s59
    %s61 = sphi 0, %s59
    %s62 = sphi 0, %s61
    %s76 = sphi 0, %s62
    %s80 = sphi 0, %s80
    %s82 = sphi 0, %s80
    %s83 = sphi 0, %s82
    %s97 = sphi 0, %s83
    %s101 = sphi 0, %s101
    %s103 = sphi 0, %s101
    %s104 = sphi 0, %s103
    %s118 = sphi 0, %s104
    %s122 = sphi 0, %s122
    %s124 = sphi 0, %s122
    %s125 = sphi 0, %s124
    %s139 = sphi 0, %s125
    %s143 = sphi 0, %s143
    %s145 = sphi 0, %s143
    %s146 = sphi 0, %s145
    %s160 = sphi 0, %s146
    %s164 = sphi 0, %s164
    %s166 = sphi 0, %s164
    %s167 = sphi 0, %s166
    %s181 = sphi 0, %s167
    %s189 = sphi 0, %s191
    %s192 = sphi 0, %s189
    %s193 = sphi 0, %s192
    %s209 = sphi 0, %s193
  $region4: #{_bottleneck_pallas_impl.1} parent=0 // loop_header_branch
    %16 = sbr.rel (%p14) target = $region8
  $region5: #{_bottleneck_pallas_impl.1} parent=0 // loop_body
    %s18 = ssub.s32 %s13, 1
    %s19 = ssub.s32 %s13, 2
    %s26 = sadd.s32 1, %s21
    %p27 = scmp.ge.s32.totalorder %s26, 1
    %s28 = scalar_select %p27, 0, %s26
    %s29 = sadd.s32 1, %s20
    %s30 = scalar_select %p27, %s29, %s20
    %p31 = scmp.ge.s32.totalorder %s30, 2
    %s32 = scalar_select %p31, 0, %s30
    %s33 = ssub.s32 %s20, %s32
    %p34 = scmp.eq.s32.totalorder %s33, 0
    %s36 = sadd.s32 %s35, 1
    %s37 = scalar_select %p34, %s35, %s36
    %p40 = pneg %p34
    %p41 = scmp.eq.s32.totalorder %s13, 1
    %p42 = por %p40, %p41
    %p43 = scmp.ne.s32.totalorder %s35, %s38
    %p44 = scmp.eq.s32.totalorder %s13, 0
    %p45 = por %p43, %p44
    %p46 = scmp.ne.s32.totalorder %s35, %s38
    %p47 = scmp.eq.s32.totalorder %s18, 1
    %p48 = por %p46, %p47
    %p49 = scmp.ne.s32.totalorder %s38, %s39
    %p50 = scmp.eq.s32.totalorder %s18, 0
    %p51 = por %p49, %p50
    %p52 = scmp.ne.s32.totalorder %s38, %s39
    %p53 = scmp.eq.s32.totalorder %s19, 1
    %p54 = por %p52, %p53
    %p56 = scmp.ne.s32.totalorder %s39, %s55
    %p57 = scmp.eq.s32.totalorder %s19, 0
    %p58 = por %p56, %p57
    %s60 = sadd.s32 %s59, 1
    %p63 = scmp.eq.s32.totalorder %s13, 1
    %p64 = scmp.ne.s32.totalorder %s59, %s61
    %p65 = scmp.eq.s32.totalorder %s13, 0
    %p66 = por %p64, %p65
    %p67 = scmp.ne.s32.totalorder %s59, %s61
    %p68 = scmp.eq.s32.totalorder %s18, 1
    %p69 = por %p67, %p68
    %p70 = scmp.ne.s32.totalorder %s61, %s62
    %p71 = scmp.eq.s32.totalorder %s18, 0
    %p72 = por %p70, %p71
    %p73 = scmp.ne.s32.totalorder %s61, %s62
    %p74 = scmp.eq.s32.totalorder %s19, 1
    %p75 = por %p73, %p74
    %p77 = scmp.ne.s32.totalorder %s62, %s76
    %p78 = scmp.eq.s32.totalorder %s19, 0
    %p79 = por %p77, %p78
    %s81 = sadd.s32 %s80, 1
    %p84 = scmp.eq.s32.totalorder %s13, 1
    %p85 = scmp.ne.s32.totalorder %s80, %s82
    %p86 = scmp.eq.s32.totalorder %s13, 0
    %p87 = por %p85, %p86
    %p88 = scmp.ne.s32.totalorder %s80, %s82
    %p89 = scmp.eq.s32.totalorder %s18, 1
    %p90 = por %p88, %p89
    %p91 = scmp.ne.s32.totalorder %s82, %s83
    %p92 = scmp.eq.s32.totalorder %s18, 0
    %p93 = por %p91, %p92
    %p94 = scmp.ne.s32.totalorder %s82, %s83
    %p95 = scmp.eq.s32.totalorder %s19, 1
    %p96 = por %p94, %p95
    %p98 = scmp.ne.s32.totalorder %s83, %s97
    %p99 = scmp.eq.s32.totalorder %s19, 0
    %p100 = por %p98, %p99
    %s102 = sadd.s32 %s101, 1
    %p105 = scmp.eq.s32.totalorder %s13, 1
    %p106 = scmp.ne.s32.totalorder %s101, %s103
    %p107 = scmp.eq.s32.totalorder %s13, 0
    %p108 = por %p106, %p107
    %p109 = scmp.ne.s32.totalorder %s101, %s103
    %p110 = scmp.eq.s32.totalorder %s18, 1
    %p111 = por %p109, %p110
    %p112 = scmp.ne.s32.totalorder %s103, %s104
    %p113 = scmp.eq.s32.totalorder %s18, 0
    %p114 = por %p112, %p113
    %p115 = scmp.ne.s32.totalorder %s103, %s104
    %p116 = scmp.eq.s32.totalorder %s19, 1
    %p117 = por %p115, %p116
    %p119 = scmp.ne.s32.totalorder %s104, %s118
    %p120 = scmp.eq.s32.totalorder %s19, 0
    %p121 = por %p119, %p120
    %s123 = sadd.s32 %s122, 1
    %p126 = scmp.eq.s32.totalorder %s13, 1
    %p127 = scmp.ne.s32.totalorder %s122, %s124
    %p128 = scmp.eq.s32.totalorder %s13, 0
    %p129 = por %p127, %p128
    %p130 = scmp.ne.s32.totalorder %s122, %s124
    %p131 = scmp.eq.s32.totalorder %s18, 1
    %p132 = por %p130, %p131
    %p133 = scmp.ne.s32.totalorder %s124, %s125
    %p134 = scmp.eq.s32.totalorder %s18, 0
    %p135 = por %p133, %p134
    %p136 = scmp.ne.s32.totalorder %s124, %s125
    %p137 = scmp.eq.s32.totalorder %s19, 1
    %p138 = por %p136, %p137
    %p140 = scmp.ne.s32.totalorder %s125, %s139
    %p141 = scmp.eq.s32.totalorder %s19, 0
    %p142 = por %p140, %p141
    %s144 = sadd.s32 %s143, 1
    %p147 = scmp.eq.s32.totalorder %s13, 1
    %p148 = scmp.ne.s32.totalorder %s143, %s145
    %p149 = scmp.eq.s32.totalorder %s13, 0
    %p150 = por %p148, %p149
    %p151 = scmp.ne.s32.totalorder %s143, %s145
    %p152 = scmp.eq.s32.totalorder %s18, 1
    %p153 = por %p151, %p152
    %p154 = scmp.ne.s32.totalorder %s145, %s146
    %p155 = scmp.eq.s32.totalorder %s18, 0
    %p156 = por %p154, %p155
    %p157 = scmp.ne.s32.totalorder %s145, %s146
    %p158 = scmp.eq.s32.totalorder %s19, 1
    %p159 = por %p157, %p158
    %p161 = scmp.ne.s32.totalorder %s146, %s160
    %p162 = scmp.eq.s32.totalorder %s19, 0
    %p163 = por %p161, %p162
    %s165 = sadd.s32 %s164, 1
    %p168 = scmp.eq.s32.totalorder %s13, 1
    %p169 = scmp.ne.s32.totalorder %s164, %s166
    %p170 = scmp.eq.s32.totalorder %s13, 0
    %p171 = por %p169, %p170
    %p172 = scmp.ne.s32.totalorder %s164, %s166
    %p173 = scmp.eq.s32.totalorder %s18, 1
    %p174 = por %p172, %p173
    %p175 = scmp.ne.s32.totalorder %s166, %s167
    %p176 = scmp.eq.s32.totalorder %s18, 0
    %p177 = por %p175, %p176
    %p178 = scmp.ne.s32.totalorder %s166, %s167
    %p179 = scmp.eq.s32.totalorder %s19, 1
    %p180 = por %p178, %p179
    %p182 = scmp.ne.s32.totalorder %s167, %s181
    %p183 = scmp.eq.s32.totalorder %s19, 0
    %p184 = por %p182, %p183
    %s185 = ssub.s32 %s20, %s32
    %s186 = ssub.s32 %s21, %s28
    %s187 = sor.u32 %s185, %s186
    %p188 = scmp.eq.s32.totalorder %s187, 0
    %s190 = sadd.s32 %s189, 1
    %s191 = scalar_select %p188, %s189, %s190
    %p194 = pneg %p188
    %p195 = scmp.eq.s32.totalorder %s13, 1
    %p196 = por %p194, %p195
    %p197 = scmp.ne.s32.totalorder %s189, %s192
    %p198 = scmp.eq.s32.totalorder %s13, 0
    %p199 = por %p197, %p198
    %p200 = scmp.ne.s32.totalorder %s189, %s192
    %p201 = scmp.eq.s32.totalorder %s18, 1
    %p202 = por %p200, %p201
    %p203 = scmp.ne.s32.totalorder %s192, %s193
    %p204 = scmp.eq.s32.totalorder %s18, 0
    %p205 = por %p203, %p204
    %p206 = scmp.ne.s32.totalorder %s192, %s193
    %p207 = scmp.eq.s32.totalorder %s19, 1
    %p208 = por %p206, %p207
    %p210 = scmp.ne.s32.totalorder %s193, %s209
    %p211 = scmp.eq.s32.totalorder %s19, 0
    %p212 = por %p210, %p211
    %p213 = scmp.le.s32.totalorder 1, %s13
    %p214 = scmp.lt.s32.totalorder %s13, 3
    %p215 = pnand %p213, %p214
    %p216 = pneg %p215
    // Predicated region
    $region9: #{_bottleneck_pallas_impl.1} parent=5 // pred_check
      _
    $region10: #{_bottleneck_pallas_impl.1} parent=5 // pred_check_branch
      %218 = sbr.rel (%p215) target = $region12
    $region11: #{_bottleneck_pallas_impl.1} parent=5 // pred_region
      %s219 = ssub.s32 %s13, 1
      // Predicated region
      $region13: #{_bottleneck_pallas_impl.1} parent=11 // pred_check
        %p220 = pneg %p72
      $region14: #{_bottleneck_pallas_impl.1} parent=11 // pred_check_branch
        %222 = sbr.rel (%p220) target = $region16
      $region15: #{_bottleneck_pallas_impl.1} parent=11 // pred_region
        _
      $region16: #{_bottleneck_pallas_impl.1} parent=11 // pred_fallthru
        _
      // Predicated region
      $region17: #{_bottleneck_pallas_impl.1} parent=11 // pred_check
        %p223 = pneg %p93
      $region18: #{_bottleneck_pallas_impl.1} parent=11 // pred_check_branch
        %225 = sbr.rel (%p223) target = $region20
      $region19: #{_bottleneck_pallas_impl.1} parent=11 // pred_region
        _
      $region20: #{_bottleneck_pallas_impl.1} parent=11 // pred_fallthru
        _
      // Predicated region
      $region21: #{_bottleneck_pallas_impl.1} parent=11 // pred_check
        %p226 = pneg %p114
      $region22: #{_bottleneck_pallas_impl.1} parent=11 // pred_check_branch
        %228 = sbr.rel (%p226) target = $region24
      $region23: #{_bottleneck_pallas_impl.1} parent=11 // pred_region
        _
      $region24: #{_bottleneck_pallas_impl.1} parent=11 // pred_fallthru
        _
      // Predicated region
      $region25: #{_bottleneck_pallas_impl.1} parent=11 // pred_check
        %p229 = pneg %p135
      $region26: #{_bottleneck_pallas_impl.1} parent=11 // pred_check_branch
        %231 = sbr.rel (%p229) target = $region28
      $region27: #{_bottleneck_pallas_impl.1} parent=11 // pred_region
        _
      $region28: #{_bottleneck_pallas_impl.1} parent=11 // pred_fallthru
        _
      // Predicated region
      $region29: #{_bottleneck_pallas_impl.1} parent=11 // pred_check
        %p232 = pneg %p156
      $region30: #{_bottleneck_pallas_impl.1} parent=11 // pred_check_branch
        %234 = sbr.rel (%p232) target = $region32
      $region31: #{_bottleneck_pallas_impl.1} parent=11 // pred_region
        _
      $region32: #{_bottleneck_pallas_impl.1} parent=11 // pred_fallthru
        _
      // Predicated region
      $region33: #{_bottleneck_pallas_impl.1} parent=11 // pred_check
        %p235 = pneg %p177
      $region34: #{_bottleneck_pallas_impl.1} parent=11 // pred_check_branch
        %237 = sbr.rel (%p235) target = $region36
      $region35: #{_bottleneck_pallas_impl.1} parent=11 // pred_region
        _
      $region36: #{_bottleneck_pallas_impl.1} parent=11 // pred_fallthru
        _
    $region12: #{_bottleneck_pallas_impl.1} parent=5 // pred_fallthru
      _
    %p238 = scmp.lt.s32.totalorder %s13, 2
    // Predicated region
    $region37: #{_bottleneck_pallas_impl.1} parent=5 // pred_check
      %p239 = pneg %p238
    $region38: #{_bottleneck_pallas_impl.1} parent=5 // pred_check_branch
      %241 = sbr.rel (%p239) target = $region40
    $region39: #{_bottleneck_pallas_impl.1} parent=5 // pred_region
      // Predicated region
      $region41: #{_bottleneck_pallas_impl.1} parent=39 // pred_check
        %p242 = pneg %p45
      $region42: #{_bottleneck_pallas_impl.1} parent=39 // pred_check_branch
        %244 = sbr.rel (%p242) target = $region44
      $region43: #{_bottleneck_pallas_impl.1} parent=39 // pred_region
        %p245 = scmp.lt.s32.totalorder %s20, 1
        %s246 = scalar_select %p245, %s20, 1
        %s247 = smul.addr %s246, 36
        %s248 = smul.addr %s247, 4
        %s249 = scalar_lea.vmem %s0, %s248
      $region44: #{_bottleneck_pallas_impl.1} parent=39 // pred_fallthru
        _
    $region40: #{_bottleneck_pallas_impl.1} parent=5 // pred_fallthru
      _
    %p250 = scmp.le.s32.totalorder 1, %s13
    %p251 = scmp.lt.s32.totalorder %s13, 3
    %p252 = pnand %p250, %p251
    %p253 = pneg %p252
    // Predicated region
    $region45: #{_bottleneck_pallas_impl.1} parent=5 // pred_check
      _
    $region46: #{_bottleneck_pallas_impl.1} parent=5 // pred_check_branch
      %255 = sbr.rel (%p252) target = $region48
    $region47: #{_bottleneck_pallas_impl.1} parent=5 // pred_region
      %s256 = ssub.s32 %s13, 1
      %p257 = scmp.lt.s32.totalorder %s22, 1
      %s258 = scalar_select %p257, %s22, 1
      %s259 = smul.addr %s258, 36
      %s260 = smul.addr %s259, 4
      %s261 = scalar_lea.vmem %s0, %s260
      %p262 = pneg %p51
      %p263 = pneg %p48
      %p264 = pneg %p72
      %p265 = pneg %p69
      %p266 = pneg %p93
      %p267 = pneg %p90
      %p268 = pneg %p114
      %p269 = pneg %p111
      %p270 = pneg %p135
      %p271 = pneg %p132
      %p272 = pneg %p156
      %p273 = pneg %p153
      %p274 = pneg %p177
      %p275 = pneg %p174
      %p276 = pneg %p205
      %p277 = pneg %p202
      %s278 = smul.u32 16, %s23
      %p279 = scmp.lt.s32.totalorder %s22, 1
      %s280 = scalar_select %p279, %s22, 1
      %p281 = scmp.lt.s32.totalorder %s278, 15
      %s282 = scalar_select %p281, %s278, 15
      %s283 = smul.addr %s282, 2
      %s284 = smul.addr %s280, 32
      %s285 = sadd.s32 %s283, %s284
      %s286 = smul.addr %s285, 8
      %s287 = scalar_lea.vmem %s7, %s286
      %p288 = scmp.lt.s32.totalorder %s22, 1
      %s289 = scalar_select %p288, %s22, 1
      %s290 = smul.addr %s289, 36
      %s291 = smul.addr %s290, 4
      %s292 = scalar_lea.vmem %s0, %s291
      %s293 = smul.u32 16, %s23
      %p294 = scmp.lt.s32.totalorder %s22, 1
      %s295 = scalar_select %p294, %s22, 1
      %p296 = scmp.lt.s32.totalorder %s293, 15
      %s297 = scalar_select %p296, %s293, 15
      %s298 = smul.addr %s297, 2
      %s299 = smul.addr %s295, 32
      %s300 = sadd.s32 %s298, %s299
      %s301 = smul.addr %s300, 8
      %s302 = scalar_lea.vmem %s7, %s301
      %s303 = smul.u32 16, %s23
      %s305 = smul.u32 %s23, 16
      %s306 = smul.u32 %s305, 2
      %s307 = smul.addr %s306, 4
      %s308 = scalar_lea.vmem %s292, %s307
      %v309 = vld [vmem:[%s308] sm:$0xf]
      %v310 = vld [vmem:[%s308 + $0x4] sm:$0xf]
      %v311 = vld [vmem:[%s308 + $0x8] sm:$0xf]
      %v312 = vld [vmem:[%s308 + $0xc] sm:$0xf]
      %v313 = vld [vmem:[%s308 + $0x10] sm:$0xf]
      %v314 = vld [vmem:[%s308 + $0x14] sm:$0xf]
      %v315 = vld [vmem:[%s308 + $0x18] sm:$0xf]
      %v316 = vld [vmem:[%s308 + $0x1c] sm:$0xf]
      %v317 = vld [vmem:[%s308 + $0x20] sm:$0xf]
      %v318 = vld [vmem:[%s308 + $0x24] sm:$0xf]
      %v319 = vld [vmem:[%s308 + $0x28] sm:$0xf]
      %v320 = vld [vmem:[%s308 + $0x2c] sm:$0xf]
      %v321 = vld [vmem:[%s308 + $0x30] sm:$0xf]
      %v322 = vld [vmem:[%s308 + $0x34] sm:$0xf]
      %v323 = vld [vmem:[%s308 + $0x38] sm:$0xf]
      %v324 = vld [vmem:[%s308 + $0x3c] sm:$0xf]
      %v325 = vld [vmem:[%s308 + $0x40] sm:$0xf]
      %v326 = vld [vmem:[%s308 + $0x44] sm:$0xf]
      %v327 = vld [vmem:[%s308 + $0x48] sm:$0xf]
      %v328 = vld [vmem:[%s308 + $0x4c] sm:$0xf]
      %v329 = vld [vmem:[%s308 + $0x50] sm:$0xf]
      %v330 = vld [vmem:[%s308 + $0x54] sm:$0xf]
      %v331 = vld [vmem:[%s308 + $0x58] sm:$0xf]
      %v332 = vld [vmem:[%s308 + $0x5c] sm:$0xf]
      %v333 = vld [vmem:[%s308 + $0x60] sm:$0xf]
      %v334 = vld [vmem:[%s308 + $0x64] sm:$0xf]
      %v335 = vld [vmem:[%s308 + $0x68] sm:$0xf]
      %v336 = vld [vmem:[%s308 + $0x6c] sm:$0xf]
      %v337 = vld [vmem:[%s308 + $0x70] sm:$0xf]
      %v338 = vld [vmem:[%s308 + $0x74] sm:$0xf]
      %v339 = vld [vmem:[%s308 + $0x78] sm:$0xf]
      %v340 = vld [vmem:[%s308 + $0x7c] sm:$0xf]
      %v341 = vld [vmem:[%s308 + $0x80] sm:$0xf]
      %v342 = vld [vmem:[%s308 + $0x84] sm:$0xf]
      %v343 = vld [vmem:[%s308 + $0x88] sm:$0xf]
      %v344 = vld [vmem:[%s308 + $0x8c] sm:$0xf]
      %v345 = vld [vmem:[%s1] sm:$0xf]
      %v346 = vld [vmem:[%s1 + $0x4] sm:$0xf]
      %v347 = vld [vmem:[%s1 + $0x8] sm:$0xf]
      %v348 = vld [vmem:[%s1 + $0xc] sm:$0xf]
      %v349 = vld [vmem:[%s1 + $0x10] sm:$0xf]
      %v350 = vld [vmem:[%s1 + $0x14] sm:$0xf]
      %v351 = vld [vmem:[%s1 + $0x18] sm:$0xf]
      %v352 = vld [vmem:[%s1 + $0x1c] sm:$0xf]
      %v353 = vld [vmem:[%s1 + $0x20] sm:$0xf]
      %v354 = vld [vmem:[%s1 + $0x24] sm:$0xf]
      %v355 = vld [vmem:[%s1 + $0x28] sm:$0xf]
      %v356 = vld [vmem:[%s1 + $0x2c] sm:$0xf]
      %v357 = vld [vmem:[%s1 + $0x30] sm:$0xf]
      %v358 = vld [vmem:[%s1 + $0x34] sm:$0xf]
      %v359 = vld [vmem:[%s1 + $0x38] sm:$0xf]
      %v360 = vld [vmem:[%s1 + $0x3c] sm:$0xf]
      %v361 = vld [vmem:[%s2] sm:$0x1]
      %v363 = vlaneseq
      %v364 = vshrl.u32 %v363, 7
      %v365 = vsub.s32 0, %v364
      %v366 = vrot.slane %v361, %v365
      %v404 = vunpack.c.l.b16 %v309
      %v405 = vunpack.c.l.b16 %v310
      %v406 = vunpack.c.l.b16 %v311
      %v407 = vunpack.c.l.b16 %v312
      %v408 = vunpack.c.l.b16 %v313
      %v409 = vunpack.c.l.b16 %v314
      %v410 = vunpack.c.l.b16 %v315
      %v411 = vunpack.c.l.b16 %v316
      %v412 = vunpack.c.l.b16 %v317
      %v413 = vunpack.c.l.b16 %v318
      %v414 = vunpack.c.l.b16 %v319
      %v415 = vunpack.c.l.b16 %v320
      %v416 = vunpack.c.l.b16 %v321
      %v417 = vunpack.c.l.b16 %v322
      %v418 = vunpack.c.l.b16 %v323
      %v419 = vunpack.c.l.b16 %v324
      %v420 = vunpack.c.l.b16 %v325
      %v421 = vunpack.c.l.b16 %v326
      %v422 = vunpack.c.l.b16 %v327
      %v423 = vunpack.c.l.b16 %v328
      %v424 = vunpack.c.l.b16 %v329
      %v425 = vunpack.c.l.b16 %v330
      %v426 = vunpack.c.l.b16 %v331
      %v427 = vunpack.c.l.b16 %v332
      %v428 = vunpack.c.l.b16 %v333
      %v429 = vunpack.c.l.b16 %v334
      %v430 = vunpack.c.l.b16 %v335
      %v431 = vunpack.c.l.b16 %v336
      %v432 = vunpack.c.l.b16 %v337
      %v433 = vunpack.c.l.b16 %v338
      %v434 = vunpack.c.l.b16 %v339
      %v435 = vunpack.c.l.b16 %v340
      %v436 = vunpack.c.l.b16 %v341
      %v437 = vunpack.c.l.b16 %v342
      %v438 = vunpack.c.l.b16 %v343
      %v439 = vunpack.c.l.b16 %v344
      %v440 = vpack.c.b16 %v405, %v404
      %v441 = vpack.c.b16 %v407, %v406
      %v442 = vpack.c.b16 %v409, %v408
      %v443 = vpack.c.b16 %v411, %v410
      %v444 = vpack.c.b16 %v413, %v412
      %v445 = vpack.c.b16 %v415, %v414
      %v446 = vpack.c.b16 %v417, %v416
      %v447 = vpack.c.b16 %v419, %v418
      %v448 = vpack.c.b16 %v421, %v420
      %v449 = vpack.c.b16 %v423, %v422
      %v450 = vpack.c.b16 %v425, %v424
      %v451 = vpack.c.b16 %v427, %v426
      %v452 = vpack.c.b16 %v429, %v428
      %v453 = vpack.c.b16 %v431, %v430
      %v454 = vpack.c.b16 %v433, %v432
      %v455 = vpack.c.b16 %v435, %v434
      %v456 = vpack.c.b16 %v437, %v436
      %v457 = vpack.c.b16 %v439, %v438
      %v492 = vunpack.c.l.b16 %v345
      %v493 = vunpack.c.l.b16 %v346
      %v494 = vunpack.c.l.b16 %v347
      %v495 = vunpack.c.l.b16 %v348
      %v496 = vunpack.c.l.b16 %v349
      %v497 = vunpack.c.l.b16 %v350
      %v498 = vunpack.c.l.b16 %v351
      %v499 = vunpack.c.l.b16 %v352
      %v500 = vunpack.c.l.b16 %v353
      %v501 = vunpack.c.l.b16 %v354
      %v502 = vunpack.c.l.b16 %v355
      %v503 = vunpack.c.l.b16 %v356
      %v504 = vunpack.c.l.b16 %v357
      %v505 = vunpack.c.l.b16 %v358
      %v506 = vunpack.c.l.b16 %v359
      %v507 = vunpack.c.l.b16 %v360
      %v508 = vpack.c.b16 %v493, %v492
      %v509 = vpack.c.b16 %v495, %v494
      %v510 = vpack.c.b16 %v497, %v496
      %v511 = vpack.c.b16 %v499, %v498
      %v512 = vpack.c.b16 %v501, %v500
      %v513 = vpack.c.b16 %v503, %v502
      %v514 = vpack.c.b16 %v505, %v504
      %v515 = vpack.c.b16 %v507, %v506
      %524 = vmatprep.subr.bf16.mxu0 0
      %525 = vmatpush1.bf16.msra.mxu0 %v515
      %526 = vmatprep.subr.bf16.mxu0 0
      %527 = vmatpush1.bf16.msra.mxu0 %v514
      %528 = vmatprep.subr.bf16.mxu0 0
      %529 = vmatpush1.bf16.msra.mxu0 %v513
      %530 = vmatprep.subr.bf16.mxu0 0
      %531 = vmatpush1.bf16.msra.mxu0 %v512
      %532 = vmatprep.subr.bf16.mxu0 0
      %533 = vmatpush1.bf16.msra.mxu0 %v511
      %534 = vmatprep.subr.bf16.mxu0 0
      %535 = vmatpush1.bf16.msra.mxu0 %v510
      %536 = vmatprep.subr.bf16.mxu0 0
      %537 = vmatpush1.bf16.msra.mxu0 %v509
      %538 = vmatprep.subr.bf16.mxu0 0
      %539 = vmatpush1.bf16.msra.mxu0 %v508
      %540 = vmatprep.subr.bf16.mxu0 0
      %541 = vmatpush2.bf16.msra.mxu0 0
      %542 = vmatprep.subr.bf16.mxu0 0
      %543 = vmatpush2.bf16.msra.mxu0 0
      %544 = vmatprep.subr.bf16.mxu0 0
      %545 = vmatpush2.bf16.msra.mxu0 0
      %546 = vmatprep.subr.bf16.mxu0 0
      %547 = vmatpush2.bf16.msra.mxu0 0
      %548 = vmatprep.subr.bf16.mxu0 0
      %549 = vmatpush2.bf16.msra.mxu0 0
      %550 = vmatprep.subr.bf16.mxu0 0
      %551 = vmatpush2.bf16.msra.mxu0 0
      %552 = vmatprep.subr.bf16.mxu0 0
      %553 = vmatpush2.bf16.msra.mxu0 0
      %554 = vmatprep.subr.bf16.mxu0 0
      %555 = vmatpush2.bf16.msra.mxu0 0
      %556 = vmatprep.mubr.bf16.mxu0 0
      %557 = vmatmul.mubr.bf16.gmra.mxu0 %v440
      %v558 = vpop.f32.mrf.mxu0
      %v559 = vadd.f32 %v366, %v558
      %v560 = vpop.f32.mrf.mxu0
      %v561 = vpop.f32.mrf.mxu0
      %v562 = vadd.f32 %v366, %v561
      %v563 = vpop.f32.mrf.mxu0
      %564 = vmatprep.mubr.bf16.mxu0 0
      %565 = vmatmul.mubr.bf16.gmra.mxu0 %v441
      %v566 = vpop.f32.mrf.mxu0
      %v567 = vadd.f32 %v366, %v566
      %v568 = vpop.f32.mrf.mxu0
      %v569 = vpop.f32.mrf.mxu0
      %v570 = vadd.f32 %v366, %v569
      %v571 = vpop.f32.mrf.mxu0
      %572 = vmatprep.mubr.bf16.mxu0 0
      %573 = vmatmul.mubr.bf16.gmra.mxu0 %v442
      %v574 = vpop.f32.mrf.mxu0
      %v575 = vadd.f32 %v366, %v574
      %v576 = vpop.f32.mrf.mxu0
      %v577 = vpop.f32.mrf.mxu0
      %v578 = vadd.f32 %v366, %v577
      %v579 = vpop.f32.mrf.mxu0
      %580 = vmatprep.mubr.bf16.mxu0 0
      %581 = vmatmul.mubr.bf16.gmra.mxu0 %v443
      %v582 = vpop.f32.mrf.mxu0
      %v583 = vadd.f32 %v366, %v582
      %v584 = vpop.f32.mrf.mxu0
      %v585 = vpop.f32.mrf.mxu0
      %v586 = vadd.f32 %v366, %v585
      %v587 = vpop.f32.mrf.mxu0
      %588 = vmatprep.mubr.bf16.mxu0 0
      %589 = vmatmul.mubr.bf16.gmra.mxu0 %v444
      %v590 = vpop.f32.mrf.mxu0
      %v591 = vadd.f32 %v366, %v590
      %v592 = vpop.f32.mrf.mxu0
      %v593 = vpop.f32.mrf.mxu0
      %v594 = vadd.f32 %v366, %v593
      %v595 = vpop.f32.mrf.mxu0
      %596 = vmatprep.mubr.bf16.mxu0 0
      %597 = vmatmul.mubr.bf16.gmra.mxu0 %v445
      %v598 = vpop.f32.mrf.mxu0
      %v599 = vadd.f32 %v366, %v598
      %v600 = vpop.f32.mrf.mxu0
      %v601 = vpop.f32.mrf.mxu0
      %v602 = vadd.f32 %v366, %v601
      %v603 = vpop.f32.mrf.mxu0
      %604 = vmatprep.mubr.bf16.mxu0 0
      %605 = vmatmul.mubr.bf16.gmra.mxu0 %v446
      %v606 = vpop.f32.mrf.mxu0
      %v607 = vadd.f32 %v366, %v606
      %v608 = vpop.f32.mrf.mxu0
      %v609 = vpop.f32.mrf.mxu0
      %v610 = vadd.f32 %v366, %v609
      %v611 = vpop.f32.mrf.mxu0
      %612 = vmatprep.mubr.bf16.mxu0 0
      %613 = vmatmul.mubr.bf16.gmra.mxu0 %v447
      %v614 = vpop.f32.mrf.mxu0
      %v615 = vadd.f32 %v366, %v614
      %v616 = vpop.f32.mrf.mxu0
      %v617 = vpop.f32.mrf.mxu0
      %v618 = vadd.f32 %v366, %v617
      %v619 = vpop.f32.mrf.mxu0
      %620 = vmatprep.mubr.bf16.mxu0 0
      %621 = vmatmul.mubr.bf16.gmra.mxu0 %v448
      %v622 = vpop.f32.mrf.mxu0
      %v623 = vadd.f32 %v366, %v622
      %v624 = vpop.f32.mrf.mxu0
      %v625 = vpop.f32.mrf.mxu0
      %v626 = vadd.f32 %v366, %v625
      %v627 = vpop.f32.mrf.mxu0
      %628 = vmatprep.mubr.bf16.mxu0 0
      %629 = vmatmul.mubr.bf16.gmra.mxu0 %v449
      %v630 = vpop.f32.mrf.mxu0
      %v631 = vadd.f32 %v366, %v630
      %v632 = vpop.f32.mrf.mxu0
      %v633 = vpop.f32.mrf.mxu0
      %v634 = vadd.f32 %v366, %v633
      %v635 = vpop.f32.mrf.mxu0
      %636 = vmatprep.mubr.bf16.mxu0 0
      %637 = vmatmul.mubr.bf16.gmra.mxu0 %v450
      %v638 = vpop.f32.mrf.mxu0
      %v639 = vadd.f32 %v366, %v638
      %v640 = vpop.f32.mrf.mxu0
      %v641 = vpop.f32.mrf.mxu0
      %v642 = vadd.f32 %v366, %v641
      %v643 = vpop.f32.mrf.mxu0
      %644 = vmatprep.mubr.bf16.mxu0 0
      %645 = vmatmul.mubr.bf16.gmra.mxu0 %v451
      %v646 = vpop.f32.mrf.mxu0
      %v647 = vadd.f32 %v366, %v646
      %v648 = vpop.f32.mrf.mxu0
      %v649 = vpop.f32.mrf.mxu0
      %v650 = vadd.f32 %v366, %v649
      %v651 = vpop.f32.mrf.mxu0
      %652 = vmatprep.mubr.bf16.mxu0 0
      %653 = vmatmul.mubr.bf16.gmra.mxu0 %v452
      %v654 = vpop.f32.mrf.mxu0
      %v655 = vadd.f32 %v366, %v654
      %v656 = vpop.f32.mrf.mxu0
      %v657 = vpop.f32.mrf.mxu0
      %v658 = vadd.f32 %v366, %v657
      %v659 = vpop.f32.mrf.mxu0
      %660 = vmatprep.mubr.bf16.mxu0 0
      %661 = vmatmul.mubr.bf16.gmra.mxu0 %v453
      %v662 = vpop.f32.mrf.mxu0
      %v663 = vadd.f32 %v366, %v662
      %v664 = vpop.f32.mrf.mxu0
      %v665 = vpop.f32.mrf.mxu0
      %v666 = vadd.f32 %v366, %v665
      %v667 = vpop.f32.mrf.mxu0
      %668 = vmatprep.mubr.bf16.mxu0 0
      %669 = vmatmul.mubr.bf16.gmra.mxu0 %v454
      %v670 = vpop.f32.mrf.mxu0
      %v671 = vadd.f32 %v366, %v670
      %v672 = vpop.f32.mrf.mxu0
      %v673 = vpop.f32.mrf.mxu0
      %v674 = vadd.f32 %v366, %v673
      %v675 = vpop.f32.mrf.mxu0
      %676 = vmatprep.mubr.bf16.mxu0 0
      %677 = vmatmul.mubr.bf16.gmra.mxu0 %v455
      %v678 = vpop.f32.mrf.mxu0
      %v679 = vadd.f32 %v366, %v678
      %v680 = vpop.f32.mrf.mxu0
      %v681 = vpop.f32.mrf.mxu0
      %v682 = vadd.f32 %v366, %v681
      %v683 = vpop.f32.mrf.mxu0
      %684 = vmatprep.mubr.bf16.mxu0 0
      %685 = vmatmul.mubr.bf16.gmra.mxu0 %v456
      %v686 = vpop.f32.mrf.mxu0
      %v687 = vadd.f32 %v366, %v686
      %v688 = vpop.f32.mrf.mxu0
      %v689 = vpop.f32.mrf.mxu0
      %v690 = vadd.f32 %v366, %v689
      %v691 = vpop.f32.mrf.mxu0
      %692 = vmatprep.mubr.bf16.mxu0 0
      %693 = vmatmul.mubr.bf16.gmra.mxu0 %v457
      %v694 = vpop.f32.mrf.mxu0
      %v695 = vadd.f32 %v366, %v694
      %v696 = vpop.f32.mrf.mxu0
      %v697 = vpop.f32.mrf.mxu0
      %v698 = vadd.f32 %v366, %v697
      %v699 = vpop.f32.mrf.mxu0
      %700 = vdwg.mxu0
      %v701 = vmax.f32 %v559, 0.0
      %v702 = vmax.f32 %v562, 0.0
      %v703 = vmax.f32 %v567, 0.0
      %v704 = vmax.f32 %v570, 0.0
      %v705 = vmax.f32 %v575, 0.0
      %v706 = vmax.f32 %v578, 0.0
      %v707 = vmax.f32 %v583, 0.0
      %v708 = vmax.f32 %v586, 0.0
      %v709 = vmax.f32 %v591, 0.0
      %v710 = vmax.f32 %v594, 0.0
      %v711 = vmax.f32 %v599, 0.0
      %v712 = vmax.f32 %v602, 0.0
      %v713 = vmax.f32 %v607, 0.0
      %v714 = vmax.f32 %v610, 0.0
      %v715 = vmax.f32 %v615, 0.0
      %v716 = vmax.f32 %v618, 0.0
      %v717 = vmax.f32 %v623, 0.0
      %v718 = vmax.f32 %v626, 0.0
      %v719 = vmax.f32 %v631, 0.0
      %v720 = vmax.f32 %v634, 0.0
      %v721 = vmax.f32 %v639, 0.0
      %v722 = vmax.f32 %v642, 0.0
      %v723 = vmax.f32 %v647, 0.0
      %v724 = vmax.f32 %v650, 0.0
      %v725 = vmax.f32 %v655, 0.0
      %v726 = vmax.f32 %v658, 0.0
      %v727 = vmax.f32 %v663, 0.0
      %v728 = vmax.f32 %v666, 0.0
      %v729 = vmax.f32 %v671, 0.0
      %v730 = vmax.f32 %v674, 0.0
      %v731 = vmax.f32 %v679, 0.0
      %v732 = vmax.f32 %v682, 0.0
      %v733 = vmax.f32 %v687, 0.0
      %v734 = vmax.f32 %v690, 0.0
      %v735 = vmax.f32 %v695, 0.0
      %v736 = vmax.f32 %v698, 0.0
      %737 = vst [vmem:[#allocation2] sm:$0xff] %v701
      %738 = vst [vmem:[#allocation2 + $0x8] sm:$0xff] %v702
      %739 = vst [vmem:[#allocation2 + $0x10] sm:$0xff] %v703
      %740 = vst [vmem:[#allocation2 + $0x18] sm:$0xff] %v704
      %741 = vst [vmem:[#allocation2 + $0x20] sm:$0xff] %v705
      %742 = vst [vmem:[#allocation2 + $0x28] sm:$0xff] %v706
      %743 = vst [vmem:[#allocation2 + $0x30] sm:$0xff] %v707
      %744 = vst [vmem:[#allocation2 + $0x38] sm:$0xff] %v708
      %745 = vst [vmem:[#allocation2 + $0x40] sm:$0xff] %v709
      %746 = vst [vmem:[#allocation2 + $0x48] sm:$0xff] %v710
      %747 = vst [vmem:[#allocation2 + $0x50] sm:$0xff] %v711
      %748 = vst [vmem:[#allocation2 + $0x58] sm:$0xff] %v712
      %749 = vst [vmem:[#allocation2 + $0x60] sm:$0xff] %v713
      %750 = vst [vmem:[#allocation2 + $0x68] sm:$0xff] %v714
      %751 = vst [vmem:[#allocation2 + $0x70] sm:$0xff] %v715
      %752 = vst [vmem:[#allocation2 + $0x78] sm:$0xff] %v716
      %753 = vst [vmem:[#allocation2 + $0x80] sm:$0xff] %v717
      %754 = vst [vmem:[#allocation2 + $0x88] sm:$0xff] %v718
      %755 = vst [vmem:[#allocation2 + $0x90] sm:$0xff] %v719
      %756 = vst [vmem:[#allocation2 + $0x98] sm:$0xff] %v720
      %757 = vst [vmem:[#allocation2 + $0xa0] sm:$0xff] %v721
      %758 = vst [vmem:[#allocation2 + $0xa8] sm:$0xff] %v722
      %759 = vst [vmem:[#allocation2 + $0xb0] sm:$0xff] %v723
      %760 = vst [vmem:[#allocation2 + $0xb8] sm:$0xff] %v724
      %761 = vst [vmem:[#allocation2 + $0xc0] sm:$0xff] %v725
      %762 = vst [vmem:[#allocation2 + $0xc8] sm:$0xff] %v726
      %763 = vst [vmem:[#allocation2 + $0xd0] sm:$0xff] %v727
      %764 = vst [vmem:[#allocation2 + $0xd8] sm:$0xff] %v728
      %765 = vst [vmem:[#allocation2 + $0xe0] sm:$0xff] %v729
      %766 = vst [vmem:[#allocation2 + $0xe8] sm:$0xff] %v730
      %767 = vst [vmem:[#allocation2 + $0xf0] sm:$0xff] %v731
      %768 = vst [vmem:[#allocation2 + $0xf8] sm:$0xff] %v732
      %769 = vst [vmem:[#allocation2 + $0x100] sm:$0xff] %v733
      %770 = vst [vmem:[#allocation2 + $0x108] sm:$0xff] %v734
      %771 = vst [vmem:[#allocation2 + $0x110] sm:$0xff] %v735
      %772 = vst [vmem:[#allocation2 + $0x118] sm:$0xff] %v736
      %p773 = scmp.eq.s32.totalorder %s23, 0
      // Predicated region
      $region49: #{_bottleneck_pallas_impl.1} parent=47 // pred_check
        %p774 = pneg %p773
      $region50: #{_bottleneck_pallas_impl.1} parent=47 // pred_check_branch
        %776 = sbr.rel (%p774) target = $region52
      $region51: #{_bottleneck_pallas_impl.1} parent=47 // pred_region
        %777 = vst [vmem:[#allocation2] sm:$0xff] 0.0
        %778 = vst [vmem:[#allocation2 + $0x8] sm:$0xff] 0.0
        %s779 = scalar_lea.vmem [#allocation2], 272
        %780 = vst [vmem:[%s779] sm:$0xff] 0.0
        %781 = vst [vmem:[%s779 + $0x8] sm:$0xff] 0.0
      $region52: #{_bottleneck_pallas_impl.1} parent=47 // pred_fallthru
        _
      %v782 = vld [vmem:[#allocation2] sm:$0xff]
      %v783 = vld [vmem:[#allocation2 + $0x8] sm:$0xff]
      %v784 = vld [vmem:[#allocation2 + $0x10] sm:$0xff]
      %v785 = vld [vmem:[#allocation2 + $0x18] sm:$0xff]
      %v786 = vld [vmem:[#allocation2 + $0x20] sm:$0xff]
      %v787 = vld [vmem:[#allocation2 + $0x28] sm:$0xff]
      %v788 = vld [vmem:[#allocation2 + $0x30] sm:$0xff]
      %v789 = vld [vmem:[#allocation2 + $0x38] sm:$0xff]
      %v790 = vld [vmem:[#allocation2 + $0x40] sm:$0xff]
      %v791 = vld [vmem:[#allocation2 + $0x48] sm:$0xff]
      %v792 = vld [vmem:[#allocation2 + $0x50] sm:$0xff]
      %v793 = vld [vmem:[#allocation2 + $0x58] sm:$0xff]
      %v794 = vld [vmem:[#allocation2 + $0x60] sm:$0xff]
      %v795 = vld [vmem:[#allocation2 + $0x68] sm:$0xff]
      %v796 = vld [vmem:[#allocation2 + $0x70] sm:$0xff]
      %v797 = vld [vmem:[#allocation2 + $0x78] sm:$0xff]
      %v798 = vld [vmem:[#allocation2 + $0x80] sm:$0xff]
      %v799 = vld [vmem:[#allocation2 + $0x88] sm:$0xff]
      %v800 = vld [vmem:[#allocation2 + $0x90] sm:$0xff]
      %v801 = vld [vmem:[#allocation2 + $0x98] sm:$0xff]
      %v802 = vld [vmem:[#allocation2 + $0xa0] sm:$0xff]
      %v803 = vld [vmem:[#allocation2 + $0xa8] sm:$0xff]
      %v804 = vld [vmem:[#allocation2 + $0xb0] sm:$0xff]
      %v805 = vld [vmem:[#allocation2 + $0xb8] sm:$0xff]
      %v806 = vld [vmem:[#allocation2 + $0xc0] sm:$0xff]
      %v807 = vld [vmem:[#allocation2 + $0xc8] sm:$0xff]
      %v808 = vld [vmem:[#allocation2 + $0xd0] sm:$0xff]
      %v809 = vld [vmem:[#allocation2 + $0xd8] sm:$0xff]
      %v810 = vld [vmem:[#allocation2 + $0xe0] sm:$0xff]
      %v811 = vld [vmem:[#allocation2 + $0xe8] sm:$0xff]
      %v812 = vld [vmem:[#allocation2 + $0xf0] sm:$0xff]
      %v813 = vld [vmem:[#allocation2 + $0xf8] sm:$0xff]
      %v814 = vld [vmem:[#allocation2 + $0x100] sm:$0xff]
      %v815 = vld [vmem:[#allocation2 + $0x108] sm:$0xff]
      %v816 = vld [vmem:[#allocation2 + $0x110] sm:$0xff]
      %v817 = vld [vmem:[#allocation2 + $0x118] sm:$0xff]
      %v818 = vlaneseq
      %v819 = vshrl.u32 %v818, 7
      %v820 = vadd.s32 %v819, 8
      %vm821 = vcmp.ne.s32.totalorder %v819, 0
      %vm822 = vcmp.ne.s32.totalorder %v820, 0
      %v823 = vsel %vm821, 1, 0
      %v824 = vsel %vm822, 1, 0
      %v825 = vcvt.s32.f32 %v823
      %v826 = vcvt.s32.f32 %v824
      %vm827 = vcmp.ne.s32.totalorder %v819, 15
      %vm828 = vcmp.ne.s32.totalorder %v820, 15
      %v829 = vsel %vm827, 1, 0
      %v830 = vsel %vm828, 1, 0
      %v831 = vcvt.s32.f32 %v829
      %v832 = vcvt.s32.f32 %v830
      %v833 = vrot.slane %v782, 7
      %v834 = vrot.slane %v784, 7
      %v835 = vrot.slane %v786, 7
      %v836 = vrot.slane %v788, 7
      %v837 = vrot.slane %v790, 7
      %v838 = vrot.slane %v792, 7
      %v839 = vrot.slane %v794, 7
      %v840 = vrot.slane %v796, 7
      %v841 = vrot.slane %v798, 7
      %v842 = vrot.slane %v800, 7
      %v843 = vrot.slane %v802, 7
      %v844 = vrot.slane %v804, 7
      %v845 = vrot.slane %v806, 7
      %v846 = vrot.slane %v808, 7
      %v847 = vrot.slane %v810, 7
      %v848 = vrot.slane %v812, 7
      %v849 = vrot.slane %v814, 7
      %v850 = vrot.slane %v816, 7
      %v851 = vrot.slane %v783, 7
      %v852 = vrot.slane %v785, 7
      %v853 = vrot.slane %v787, 7
      %v854 = vrot.slane %v789, 7
      %v855 = vrot.slane %v791, 7
      %v856 = vrot.slane %v793, 7
      %v857 = vrot.slane %v795, 7
      %v858 = vrot.slane %v797, 7
      %v859 = vrot.slane %v799, 7
      %v860 = vrot.slane %v801, 7
      %v861 = vrot.slane %v803, 7
      %v862 = vrot.slane %v805, 7
      %v863 = vrot.slane %v807, 7
      %v864 = vrot.slane %v809, 7
      %v865 = vrot.slane %v811, 7
      %v866 = vrot.slane %v813, 7
      %v867 = vrot.slane %v815, 7
      %v868 = vrot.slane %v817, 7
      %vm869 = vcmp.lt.s32.totalorder %v819, 1
      %v870 = vsel %vm869, %v833, %v851
      %v871 = vsel %vm869, %v834, %v852
      %v872 = vsel %vm869, %v835, %v853
      %v873 = vsel %vm869, %v836, %v854
      %v874 = vsel %vm869, %v837, %v855
      %v875 = vsel %vm869, %v838, %v856
      %v876 = vsel %vm869, %v839, %v857
      %v877 = vsel %vm869, %v840, %v858
      %v878 = vsel %vm869, %v841, %v859
      %v879 = vsel %vm869, %v842, %v860
      %v880 = vsel %vm869, %v843, %v861
      %v881 = vsel %vm869, %v844, %v862
      %v882 = vsel %vm869, %v845, %v863
      %v883 = vsel %vm869, %v846, %v864
      %v884 = vsel %vm869, %v847, %v865
      %v885 = vsel %vm869, %v848, %v866
      %v886 = vsel %vm869, %v849, %v867
      %v887 = vsel %vm869, %v850, %v868
      %v888 = vsel %vm869, %v851, %v833
      %v889 = vsel %vm869, %v852, %v834
      %v890 = vsel %vm869, %v853, %v835
      %v891 = vsel %vm869, %v854, %v836
      %v892 = vsel %vm869, %v855, %v837
      %v893 = vsel %vm869, %v856, %v838
      %v894 = vsel %vm869, %v857, %v839
      %v895 = vsel %vm869, %v858, %v840
      %v896 = vsel %vm869, %v859, %v841
      %v897 = vsel %vm869, %v860, %v842
      %v898 = vsel %vm869, %v861, %v843
      %v899 = vsel %vm869, %v862, %v844
      %v900 = vsel %vm869, %v863, %v845
      %v901 = vsel %vm869, %v864, %v846
      %v902 = vsel %vm869, %v865, %v847
      %v903 = vsel %vm869, %v866, %v848
      %v904 = vsel %vm869, %v867, %v849
      %v905 = vsel %vm869, %v868, %v850
      %v906 = vmul.f32 %v888, %v825
      %v907 = vmul.f32 %v870, %v826
      %v908 = vmul.f32 %v889, %v825
      %v909 = vmul.f32 %v871, %v826
      %v910 = vmul.f32 %v890, %v825
      %v911 = vmul.f32 %v872, %v826
      %v912 = vmul.f32 %v891, %v825
      %v913 = vmul.f32 %v873, %v826
      %v914 = vmul.f32 %v892, %v825
      %v915 = vmul.f32 %v874, %v826
      %v916 = vmul.f32 %v893, %v825
      %v917 = vmul.f32 %v875, %v826
      %v918 = vmul.f32 %v894, %v825
      %v919 = vmul.f32 %v876, %v826
      %v920 = vmul.f32 %v895, %v825
      %v921 = vmul.f32 %v877, %v826
      %v922 = vmul.f32 %v896, %v825
      %v923 = vmul.f32 %v878, %v826
      %v924 = vmul.f32 %v897, %v825
      %v925 = vmul.f32 %v879, %v826
      %v926 = vmul.f32 %v898, %v825
      %v927 = vmul.f32 %v880, %v826
      %v928 = vmul.f32 %v899, %v825
      %v929 = vmul.f32 %v881, %v826
      %v930 = vmul.f32 %v900, %v825
      %v931 = vmul.f32 %v882, %v826
      %v932 = vmul.f32 %v901, %v825
      %v933 = vmul.f32 %v883, %v826
      %v934 = vmul.f32 %v902, %v825
      %v935 = vmul.f32 %v884, %v826
      %v936 = vmul.f32 %v903, %v825
      %v937 = vmul.f32 %v885, %v826
      %v938 = vmul.f32 %v904, %v825
      %v939 = vmul.f32 %v886, %v826
      %v940 = vmul.f32 %v905, %v825
      %v941 = vmul.f32 %v887, %v826
      %v942 = vpack.c.bf16 %v907, %v906
      %v943 = vpack.c.bf16 %v909, %v908
      %v944 = vpack.c.bf16 %v911, %v910
      %v945 = vpack.c.bf16 %v913, %v912
      %v946 = vpack.c.bf16 %v915, %v914
      %v947 = vpack.c.bf16 %v917, %v916
      %v948 = vpack.c.bf16 %v919, %v918
      %v949 = vpack.c.bf16 %v921, %v920
      %v950 = vpack.c.bf16 %v923, %v922
      %v951 = vpack.c.bf16 %v925, %v924
      %v952 = vpack.c.bf16 %v927, %v926
      %v953 = vpack.c.bf16 %v929, %v928
      %v954 = vpack.c.bf16 %v931, %v930
      %v955 = vpack.c.bf16 %v933, %v932
      %v956 = vpack.c.bf16 %v935, %v934
      %v957 = vpack.c.bf16 %v937, %v936
      %v958 = vpack.c.bf16 %v939, %v938
      %v959 = vpack.c.bf16 %v941, %v940
      %v960 = vpack.c.bf16 %v783, %v782
      %v961 = vpack.c.bf16 %v785, %v784
      %v962 = vpack.c.bf16 %v787, %v786
      %v963 = vpack.c.bf16 %v789, %v788
      %v964 = vpack.c.bf16 %v791, %v790
      %v965 = vpack.c.bf16 %v793, %v792
      %v966 = vpack.c.bf16 %v795, %v794
      %v967 = vpack.c.bf16 %v797, %v796
      %v968 = vpack.c.bf16 %v799, %v798
      %v969 = vpack.c.bf16 %v801, %v800
      %v970 = vpack.c.bf16 %v803, %v802
      %v971 = vpack.c.bf16 %v805, %v804
      %v972 = vpack.c.bf16 %v807, %v806
      %v973 = vpack.c.bf16 %v809, %v808
      %v974 = vpack.c.bf16 %v811, %v810
      %v975 = vpack.c.bf16 %v813, %v812
      %v976 = vpack.c.bf16 %v815, %v814
      %v977 = vpack.c.bf16 %v817, %v816
      %v978 = vrot.slane %v782, 1
      %v979 = vrot.slane %v784, 1
      %v980 = vrot.slane %v786, 1
      %v981 = vrot.slane %v788, 1
      %v982 = vrot.slane %v790, 1
      %v983 = vrot.slane %v792, 1
      %v984 = vrot.slane %v794, 1
      %v985 = vrot.slane %v796, 1
      %v986 = vrot.slane %v798, 1
      %v987 = vrot.slane %v800, 1
      %v988 = vrot.slane %v802, 1
      %v989 = vrot.slane %v804, 1
      %v990 = vrot.slane %v806, 1
      %v991 = vrot.slane %v808, 1
      %v992 = vrot.slane %v810, 1
      %v993 = vrot.slane %v812, 1
      %v994 = vrot.slane %v814, 1
      %v995 = vrot.slane %v816, 1
      %v996 = vrot.slane %v783, 1
      %v997 = vrot.slane %v785, 1
      %v998 = vrot.slane %v787, 1
      %v999 = vrot.slane %v789, 1
      %v1000 = vrot.slane %v791, 1
      %v1001 = vrot.slane %v793, 1
      %v1002 = vrot.slane %v795, 1
      %v1003 = vrot.slane %v797, 1
      %v1004 = vrot.slane %v799, 1
      %v1005 = vrot.slane %v801, 1
      %v1006 = vrot.slane %v803, 1
      %v1007 = vrot.slane %v805, 1
      %v1008 = vrot.slane %v807, 1
      %v1009 = vrot.slane %v809, 1
      %v1010 = vrot.slane %v811, 1
      %v1011 = vrot.slane %v813, 1
      %v1012 = vrot.slane %v815, 1
      %v1013 = vrot.slane %v817, 1
      %vm1014 = vcmp.lt.s32.totalorder %v819, 7
      %v1015 = vsel %vm1014, %v978, %v996
      %v1016 = vsel %vm1014, %v979, %v997
      %v1017 = vsel %vm1014, %v980, %v998
      %v1018 = vsel %vm1014, %v981, %v999
      %v1019 = vsel %vm1014, %v982, %v1000
      %v1020 = vsel %vm1014, %v983, %v1001
      %v1021 = vsel %vm1014, %v984, %v1002
      %v1022 = vsel %vm1014, %v985, %v1003
      %v1023 = vsel %vm1014, %v986, %v1004
      %v1024 = vsel %vm1014, %v987, %v1005
      %v1025 = vsel %vm1014, %v988, %v1006
      %v1026 = vsel %vm1014, %v989, %v1007
      %v1027 = vsel %vm1014, %v990, %v1008
      %v1028 = vsel %vm1014, %v991, %v1009
      %v1029 = vsel %vm1014, %v992, %v1010
      %v1030 = vsel %vm1014, %v993, %v1011
      %v1031 = vsel %vm1014, %v994, %v1012
      %v1032 = vsel %vm1014, %v995, %v1013
      %v1033 = vsel %vm1014, %v996, %v978
      %v1034 = vsel %vm1014, %v997, %v979
      %v1035 = vsel %vm1014, %v998, %v980
      %v1036 = vsel %vm1014, %v999, %v981
      %v1037 = vsel %vm1014, %v1000, %v982
      %v1038 = vsel %vm1014, %v1001, %v983
      %v1039 = vsel %vm1014, %v1002, %v984
      %v1040 = vsel %vm1014, %v1003, %v985
      %v1041 = vsel %vm1014, %v1004, %v986
      %v1042 = vsel %vm1014, %v1005, %v987
      %v1043 = vsel %vm1014, %v1006, %v988
      %v1044 = vsel %vm1014, %v1007, %v989
      %v1045 = vsel %vm1014, %v1008, %v990
      %v1046 = vsel %vm1014, %v1009, %v991
      %v1047 = vsel %vm1014, %v1010, %v992
      %v1048 = vsel %vm1014, %v1011, %v993
      %v1049 = vsel %vm1014, %v1012, %v994
      %v1050 = vsel %vm1014, %v1013, %v995
      %v1051 = vmul.f32 %v1015, %v831
      %v1052 = vmul.f32 %v1033, %v832
      %v1053 = vmul.f32 %v1016, %v831
      %v1054 = vmul.f32 %v1034, %v832
      %v1055 = vmul.f32 %v1017, %v831
      %v1056 = vmul.f32 %v1035, %v832
      %v1057 = vmul.f32 %v1018, %v831
      %v1058 = vmul.f32 %v1036, %v832
      %v1059 = vmul.f32 %v1019, %v831
      %v1060 = vmul.f32 %v1037, %v832
      %v1061 = vmul.f32 %v1020, %v831
      %v1062 = vmul.f32 %v1038, %v832
      %v1063 = vmul.f32 %v1021, %v831
      %v1064 = vmul.f32 %v1039, %v832
      %v1065 = vmul.f32 %v1022, %v831
      %v1066 = vmul.f32 %v1040, %v832
      %v1067 = vmul.f32 %v1023, %v831
      %v1068 = vmul.f32 %v1041, %v832
      %v1069 = vmul.f32 %v1024, %v831
      %v1070 = vmul.f32 %v1042, %v832
      %v1071 = vmul.f32 %v1025, %v831
      %v1072 = vmul.f32 %v1043, %v832
      %v1073 = vmul.f32 %v1026, %v831
      %v1074 = vmul.f32 %v1044, %v832
      %v1075 = vmul.f32 %v1027, %v831
      %v1076 = vmul.f32 %v1045, %v832
      %v1077 = vmul.f32 %v1028, %v831
      %v1078 = vmul.f32 %v1046, %v832
      %v1079 = vmul.f32 %v1029, %v831
      %v1080 = vmul.f32 %v1047, %v832
      %v1081 = vmul.f32 %v1030, %v831
      %v1082 = vmul.f32 %v1048, %v832
      %v1083 = vmul.f32 %v1031, %v831
      %v1084 = vmul.f32 %v1049, %v832
      %v1085 = vmul.f32 %v1032, %v831
      %v1086 = vmul.f32 %v1050, %v832
      %v1087 = vpack.c.bf16 %v1052, %v1051
      %v1088 = vpack.c.bf16 %v1054, %v1053
      %v1089 = vpack.c.bf16 %v1056, %v1055
      %v1090 = vpack.c.bf16 %v1058, %v1057
      %v1091 = vpack.c.bf16 %v1060, %v1059
      %v1092 = vpack.c.bf16 %v1062, %v1061
      %v1093 = vpack.c.bf16 %v1064, %v1063
      %v1094 = vpack.c.bf16 %v1066, %v1065
      %v1095 = vpack.c.bf16 %v1068, %v1067
      %v1096 = vpack.c.bf16 %v1070, %v1069
      %v1097 = vpack.c.bf16 %v1072, %v1071
      %v1098 = vpack.c.bf16 %v1074, %v1073
      %v1099 = vpack.c.bf16 %v1076, %v1075
      %v1100 = vpack.c.bf16 %v1078, %v1077
      %v1101 = vpack.c.bf16 %v1080, %v1079
      %v1102 = vpack.c.bf16 %v1082, %v1081
      %v1103 = vpack.c.bf16 %v1084, %v1083
      %v1104 = vpack.c.bf16 %v1086, %v1085
      %v1105 = vld [vmem:[%s3] sm:$0xf]
      %v1106 = vld [vmem:[%s3 + $0x4] sm:$0xf]
      %v1107 = vld [vmem:[%s3 + $0x8] sm:$0xf]
      %v1108 = vld [vmem:[%s3 + $0xc] sm:$0xf]
      %v1109 = vld [vmem:[%s3 + $0x10] sm:$0xf]
      %v1110 = vld [vmem:[%s3 + $0x14] sm:$0xf]
      %v1111 = vld [vmem:[%s3 + $0x18] sm:$0xf]
      %v1112 = vld [vmem:[%s3 + $0x1c] sm:$0xf]
      %v1113 = vld [vmem:[%s3 + $0x20] sm:$0xf]
      %v1114 = vld [vmem:[%s3 + $0x24] sm:$0xf]
      %v1115 = vld [vmem:[%s3 + $0x28] sm:$0xf]
      %v1116 = vld [vmem:[%s3 + $0x2c] sm:$0xf]
      %v1117 = vld [vmem:[%s3 + $0x30] sm:$0xf]
      %v1118 = vld [vmem:[%s3 + $0x34] sm:$0xf]
      %v1119 = vld [vmem:[%s3 + $0x38] sm:$0xf]
      %v1120 = vld [vmem:[%s3 + $0x3c] sm:$0xf]
      %v1121 = vld [vmem:[%s3 + $0x40] sm:$0xf]
      %v1122 = vld [vmem:[%s3 + $0x44] sm:$0xf]
      %v1123 = vld [vmem:[%s3 + $0x48] sm:$0xf]
      %v1124 = vld [vmem:[%s3 + $0x4c] sm:$0xf]
      %v1125 = vld [vmem:[%s3 + $0x50] sm:$0xf]
      %v1126 = vld [vmem:[%s3 + $0x54] sm:$0xf]
      %v1127 = vld [vmem:[%s3 + $0x58] sm:$0xf]
      %v1128 = vld [vmem:[%s3 + $0x5c] sm:$0xf]
      %v1129 = vld [vmem:[%s3 + $0x60] sm:$0xf]
      %v1130 = vld [vmem:[%s3 + $0x64] sm:$0xf]
      %v1131 = vld [vmem:[%s3 + $0x68] sm:$0xf]
      %v1132 = vld [vmem:[%s3 + $0x6c] sm:$0xf]
      %v1133 = vld [vmem:[%s3 + $0x70] sm:$0xf]
      %v1134 = vld [vmem:[%s3 + $0x74] sm:$0xf]
      %v1135 = vld [vmem:[%s3 + $0x78] sm:$0xf]
      %v1136 = vld [vmem:[%s3 + $0x7c] sm:$0xf]
      %v1137 = vld [vmem:[%s3 + $0x80] sm:$0xf]
      %v1138 = vld [vmem:[%s3 + $0x84] sm:$0xf]
      %v1139 = vld [vmem:[%s3 + $0x88] sm:$0xf]
      %v1140 = vld [vmem:[%s3 + $0x8c] sm:$0xf]
      %v1141 = vld [vmem:[%s3 + $0x90] sm:$0xf]
      %v1142 = vld [vmem:[%s3 + $0x94] sm:$0xf]
      %v1143 = vld [vmem:[%s3 + $0x98] sm:$0xf]
      %v1144 = vld [vmem:[%s3 + $0x9c] sm:$0xf]
      %v1145 = vld [vmem:[%s3 + $0xa0] sm:$0xf]
      %v1146 = vld [vmem:[%s3 + $0xa4] sm:$0xf]
      %v1147 = vld [vmem:[%s3 + $0xa8] sm:$0xf]
      %v1148 = vld [vmem:[%s3 + $0xac] sm:$0xf]
      %v1149 = vld [vmem:[%s3 + $0xb0] sm:$0xf]
      %v1150 = vld [vmem:[%s3 + $0xb4] sm:$0xf]
      %v1151 = vld [vmem:[%s3 + $0xb8] sm:$0xf]
      %v1152 = vld [vmem:[%s3 + $0xbc] sm:$0xf]
      %v1153 = vld [vmem:[%s3 + $0xc0] sm:$0xf]
      %v1154 = vld [vmem:[%s3 + $0xc4] sm:$0xf]
      %v1155 = vld [vmem:[%s3 + $0xc8] sm:$0xf]
      %v1156 = vld [vmem:[%s3 + $0xcc] sm:$0xf]
      %v1157 = vld [vmem:[%s3 + $0xd0] sm:$0xf]
      %v1158 = vld [vmem:[%s3 + $0xd4] sm:$0xf]
      %v1159 = vld [vmem:[%s3 + $0xd8] sm:$0xf]
      %v1160 = vld [vmem:[%s3 + $0xdc] sm:$0xf]
      %v1161 = vld [vmem:[%s3 + $0xe0] sm:$0xf]
      %v1162 = vld [vmem:[%s3 + $0xe4] sm:$0xf]
      %v1163 = vld [vmem:[%s3 + $0xe8] sm:$0xf]
      %v1164 = vld [vmem:[%s3 + $0xec] sm:$0xf]
      %v1165 = vld [vmem:[%s3 + $0xf0] sm:$0xf]
      %v1166 = vld [vmem:[%s3 + $0xf4] sm:$0xf]
      %v1167 = vld [vmem:[%s3 + $0xf8] sm:$0xf]
      %v1168 = vld [vmem:[%s3 + $0xfc] sm:$0xf]
      %v1169 = vld [vmem:[%s3 + $0x100] sm:$0xf]
      %v1170 = vld [vmem:[%s3 + $0x104] sm:$0xf]
      %v1171 = vld [vmem:[%s3 + $0x108] sm:$0xf]
      %v1172 = vld [vmem:[%s3 + $0x10c] sm:$0xf]
      %v1173 = vld [vmem:[%s3 + $0x110] sm:$0xf]
      %v1174 = vld [vmem:[%s3 + $0x114] sm:$0xf]
      %v1175 = vld [vmem:[%s3 + $0x118] sm:$0xf]
      %v1176 = vld [vmem:[%s3 + $0x11c] sm:$0xf]
      %v1177 = vld [vmem:[%s3 + $0x120] sm:$0xf]
      %v1178 = vld [vmem:[%s3 + $0x124] sm:$0xf]
      %v1179 = vld [vmem:[%s3 + $0x128] sm:$0xf]
      %v1180 = vld [vmem:[%s3 + $0x12c] sm:$0xf]
      %v1181 = vld [vmem:[%s3 + $0x130] sm:$0xf]
      %v1182 = vld [vmem:[%s3 + $0x134] sm:$0xf]
      %v1183 = vld [vmem:[%s3 + $0x138] sm:$0xf]
      %v1184 = vld [vmem:[%s3 + $0x13c] sm:$0xf]
      %v1185 = vld [vmem:[%s3 + $0x140] sm:$0xf]
      %v1186 = vld [vmem:[%s3 + $0x144] sm:$0xf]
      %v1187 = vld [vmem:[%s3 + $0x148] sm:$0xf]
      %v1188 = vld [vmem:[%s3 + $0x14c] sm:$0xf]
      %v1189 = vld [vmem:[%s3 + $0x150] sm:$0xf]
      %v1190 = vld [vmem:[%s3 + $0x154] sm:$0xf]
      %v1191 = vld [vmem:[%s3 + $0x158] sm:$0xf]
      %v1192 = vld [vmem:[%s3 + $0x15c] sm:$0xf]
      %v1193 = vld [vmem:[%s3 + $0x160] sm:$0xf]
      %v1194 = vld [vmem:[%s3 + $0x164] sm:$0xf]
      %v1195 = vld [vmem:[%s3 + $0x168] sm:$0xf]
      %v1196 = vld [vmem:[%s3 + $0x16c] sm:$0xf]
      %v1197 = vld [vmem:[%s3 + $0x170] sm:$0xf]
      %v1198 = vld [vmem:[%s3 + $0x174] sm:$0xf]
      %v1199 = vld [vmem:[%s3 + $0x178] sm:$0xf]
      %v1200 = vld [vmem:[%s3 + $0x17c] sm:$0xf]
      %v1201 = vld [vmem:[%s3 + $0x180] sm:$0xf]
      %v1202 = vld [vmem:[%s3 + $0x184] sm:$0xf]
      %v1203 = vld [vmem:[%s3 + $0x188] sm:$0xf]
      %v1204 = vld [vmem:[%s3 + $0x18c] sm:$0xf]
      %v1205 = vld [vmem:[%s3 + $0x190] sm:$0xf]
      %v1206 = vld [vmem:[%s3 + $0x194] sm:$0xf]
      %v1207 = vld [vmem:[%s3 + $0x198] sm:$0xf]
      %v1208 = vld [vmem:[%s3 + $0x19c] sm:$0xf]
      %v1209 = vld [vmem:[%s3 + $0x1a0] sm:$0xf]
      %v1210 = vld [vmem:[%s3 + $0x1a4] sm:$0xf]
      %v1211 = vld [vmem:[%s3 + $0x1a8] sm:$0xf]
      %v1212 = vld [vmem:[%s3 + $0x1ac] sm:$0xf]
      %v1213 = vld [vmem:[%s3 + $0x1b0] sm:$0xf]
      %v1214 = vld [vmem:[%s3 + $0x1b4] sm:$0xf]
      %v1215 = vld [vmem:[%s3 + $0x1b8] sm:$0xf]
      %v1216 = vld [vmem:[%s3 + $0x1bc] sm:$0xf]
      %v1217 = vld [vmem:[%s3 + $0x1c0] sm:$0xf]
      %v1218 = vld [vmem:[%s3 + $0x1c4] sm:$0xf]
      %v1219 = vld [vmem:[%s3 + $0x1c8] sm:$0xf]
      %v1220 = vld [vmem:[%s3 + $0x1cc] sm:$0xf]
      %v1221 = vld [vmem:[%s3 + $0x1d0] sm:$0xf]
      %v1222 = vld [vmem:[%s3 + $0x1d4] sm:$0xf]
      %v1223 = vld [vmem:[%s3 + $0x1d8] sm:$0xf]
      %v1224 = vld [vmem:[%s3 + $0x1dc] sm:$0xf]
      %v1225 = vld [vmem:[%s3 + $0x1e0] sm:$0xf]
      %v1226 = vld [vmem:[%s3 + $0x1e4] sm:$0xf]
      %v1227 = vld [vmem:[%s3 + $0x1e8] sm:$0xf]
      %v1228 = vld [vmem:[%s3 + $0x1ec] sm:$0xf]
      %v1229 = vld [vmem:[%s3 + $0x1f0] sm:$0xf]
      %v1230 = vld [vmem:[%s3 + $0x1f4] sm:$0xf]
      %v1231 = vld [vmem:[%s3 + $0x1f8] sm:$0xf]
      %v1232 = vld [vmem:[%s3 + $0x1fc] sm:$0xf]
      %v1233 = vld [vmem:[%s3 + $0x200] sm:$0xf]
      %v1234 = vld [vmem:[%s3 + $0x204] sm:$0xf]
      %v1235 = vld [vmem:[%s3 + $0x208] sm:$0xf]
      %v1236 = vld [vmem:[%s3 + $0x20c] sm:$0xf]
      %v1237 = vld [vmem:[%s3 + $0x210] sm:$0xf]
      %v1238 = vld [vmem:[%s3 + $0x214] sm:$0xf]
      %v1239 = vld [vmem:[%s3 + $0x218] sm:$0xf]
      %v1240 = vld [vmem:[%s3 + $0x21c] sm:$0xf]
      %v1241 = vld [vmem:[%s3 + $0x220] sm:$0xf]
      %v1242 = vld [vmem:[%s3 + $0x224] sm:$0xf]
      %v1243 = vld [vmem:[%s3 + $0x228] sm:$0xf]
      %v1244 = vld [vmem:[%s3 + $0x22c] sm:$0xf]
      %v1245 = vld [vmem:[%s3 + $0x230] sm:$0xf]
      %v1246 = vld [vmem:[%s3 + $0x234] sm:$0xf]
      %v1247 = vld [vmem:[%s3 + $0x238] sm:$0xf]
      %v1248 = vld [vmem:[%s3 + $0x23c] sm:$0xf]
      %v1249 = vld [vmem:[%s4] sm:$0x1]
      %v1251 = vlaneseq
      %v1252 = vshrl.u32 %v1251, 7
      %v1253 = vsub.s32 0, %v1252
      %v1254 = vrot.slane %v1249, %v1253
      %v1400 = vunpack.c.l.b16 %v1105
      %v1401 = vunpack.c.l.b16 %v1106
      %v1402 = vunpack.c.l.b16 %v1107
      %v1403 = vunpack.c.l.b16 %v1108
      %v1404 = vunpack.c.l.b16 %v1109
      %v1405 = vunpack.c.l.b16 %v1110
      %v1406 = vunpack.c.l.b16 %v1111
      %v1407 = vunpack.c.l.b16 %v1112
      %v1408 = vunpack.c.l.b16 %v1113
      %v1409 = vunpack.c.l.b16 %v1114
      %v1410 = vunpack.c.l.b16 %v1115
      %v1411 = vunpack.c.l.b16 %v1116
      %v1412 = vunpack.c.l.b16 %v1117
      %v1413 = vunpack.c.l.b16 %v1118
      %v1414 = vunpack.c.l.b16 %v1119
      %v1415 = vunpack.c.l.b16 %v1120
      %v1416 = vunpack.c.l.b16 %v1121
      %v1417 = vunpack.c.l.b16 %v1122
      %v1418 = vunpack.c.l.b16 %v1123
      %v1419 = vunpack.c.l.b16 %v1124
      %v1420 = vunpack.c.l.b16 %v1125
      %v1421 = vunpack.c.l.b16 %v1126
      %v1422 = vunpack.c.l.b16 %v1127
      %v1423 = vunpack.c.l.b16 %v1128
      %v1424 = vunpack.c.l.b16 %v1129
      %v1425 = vunpack.c.l.b16 %v1130
      %v1426 = vunpack.c.l.b16 %v1131
      %v1427 = vunpack.c.l.b16 %v1132
      %v1428 = vunpack.c.l.b16 %v1133
      %v1429 = vunpack.c.l.b16 %v1134
      %v1430 = vunpack.c.l.b16 %v1135
      %v1431 = vunpack.c.l.b16 %v1136
      %v1432 = vunpack.c.l.b16 %v1137
      %v1433 = vunpack.c.l.b16 %v1138
      %v1434 = vunpack.c.l.b16 %v1139
      %v1435 = vunpack.c.l.b16 %v1140
      %v1436 = vunpack.c.l.b16 %v1141
      %v1437 = vunpack.c.l.b16 %v1142
      %v1438 = vunpack.c.l.b16 %v1143
      %v1439 = vunpack.c.l.b16 %v1144
      %v1440 = vunpack.c.l.b16 %v1145
      %v1441 = vunpack.c.l.b16 %v1146
      %v1442 = vunpack.c.l.b16 %v1147
      %v1443 = vunpack.c.l.b16 %v1148
      %v1444 = vunpack.c.l.b16 %v1149
      %v1445 = vunpack.c.l.b16 %v1150
      %v1446 = vunpack.c.l.b16 %v1151
      %v1447 = vunpack.c.l.b16 %v1152
      %v1448 = vunpack.c.l.b16 %v1153
      %v1449 = vunpack.c.l.b16 %v1154
      %v1450 = vunpack.c.l.b16 %v1155
      %v1451 = vunpack.c.l.b16 %v1156
      %v1452 = vunpack.c.l.b16 %v1157
      %v1453 = vunpack.c.l.b16 %v1158
      %v1454 = vunpack.c.l.b16 %v1159
      %v1455 = vunpack.c.l.b16 %v1160
      %v1456 = vunpack.c.l.b16 %v1161
      %v1457 = vunpack.c.l.b16 %v1162
      %v1458 = vunpack.c.l.b16 %v1163
      %v1459 = vunpack.c.l.b16 %v1164
      %v1460 = vunpack.c.l.b16 %v1165
      %v1461 = vunpack.c.l.b16 %v1166
      %v1462 = vunpack.c.l.b16 %v1167
      %v1463 = vunpack.c.l.b16 %v1168
      %v1464 = vunpack.c.l.b16 %v1169
      %v1465 = vunpack.c.l.b16 %v1170
      %v1466 = vunpack.c.l.b16 %v1171
      %v1467 = vunpack.c.l.b16 %v1172
      %v1468 = vunpack.c.l.b16 %v1173
      %v1469 = vunpack.c.l.b16 %v1174
      %v1470 = vunpack.c.l.b16 %v1175
      %v1471 = vunpack.c.l.b16 %v1176
      %v1472 = vunpack.c.l.b16 %v1177
      %v1473 = vunpack.c.l.b16 %v1178
      %v1474 = vunpack.c.l.b16 %v1179
      %v1475 = vunpack.c.l.b16 %v1180
      %v1476 = vunpack.c.l.b16 %v1181
      %v1477 = vunpack.c.l.b16 %v1182
      %v1478 = vunpack.c.l.b16 %v1183
      %v1479 = vunpack.c.l.b16 %v1184
      %v1480 = vunpack.c.l.b16 %v1185
      %v1481 = vunpack.c.l.b16 %v1186
      %v1482 = vunpack.c.l.b16 %v1187
      %v1483 = vunpack.c.l.b16 %v1188
      %v1484 = vunpack.c.l.b16 %v1189
      %v1485 = vunpack.c.l.b16 %v1190
      %v1486 = vunpack.c.l.b16 %v1191
      %v1487 = vunpack.c.l.b16 %v1192
      %v1488 = vunpack.c.l.b16 %v1193
      %v1489 = vunpack.c.l.b16 %v1194
      %v1490 = vunpack.c.l.b16 %v1195
      %v1491 = vunpack.c.l.b16 %v1196
      %v1492 = vunpack.c.l.b16 %v1197
      %v1493 = vunpack.c.l.b16 %v1198
      %v1494 = vunpack.c.l.b16 %v1199
      %v1495 = vunpack.c.l.b16 %v1200
      %v1496 = vunpack.c.l.b16 %v1201
      %v1497 = vunpack.c.l.b16 %v1202
      %v1498 = vunpack.c.l.b16 %v1203
      %v1499 = vunpack.c.l.b16 %v1204
      %v1500 = vunpack.c.l.b16 %v1205
      %v1501 = vunpack.c.l.b16 %v1206
      %v1502 = vunpack.c.l.b16 %v1207
      %v1503 = vunpack.c.l.b16 %v1208
      %v1504 = vunpack.c.l.b16 %v1209
      %v1505 = vunpack.c.l.b16 %v1210
      %v1506 = vunpack.c.l.b16 %v1211
      %v1507 = vunpack.c.l.b16 %v1212
      %v1508 = vunpack.c.l.b16 %v1213
      %v1509 = vunpack.c.l.b16 %v1214
      %v1510 = vunpack.c.l.b16 %v1215
      %v1511 = vunpack.c.l.b16 %v1216
      %v1512 = vunpack.c.l.b16 %v1217
      %v1513 = vunpack.c.l.b16 %v1218
      %v1514 = vunpack.c.l.b16 %v1219
      %v1515 = vunpack.c.l.b16 %v1220
      %v1516 = vunpack.c.l.b16 %v1221
      %v1517 = vunpack.c.l.b16 %v1222
      %v1518 = vunpack.c.l.b16 %v1223
      %v1519 = vunpack.c.l.b16 %v1224
      %v1520 = vunpack.c.l.b16 %v1225
      %v1521 = vunpack.c.l.b16 %v1226
      %v1522 = vunpack.c.l.b16 %v1227
      %v1523 = vunpack.c.l.b16 %v1228
      %v1524 = vunpack.c.l.b16 %v1229
      %v1525 = vunpack.c.l.b16 %v1230
      %v1526 = vunpack.c.l.b16 %v1231
      %v1527 = vunpack.c.l.b16 %v1232
      %v1528 = vunpack.c.l.b16 %v1233
      %v1529 = vunpack.c.l.b16 %v1234
      %v1530 = vunpack.c.l.b16 %v1235
      %v1531 = vunpack.c.l.b16 %v1236
      %v1532 = vunpack.c.l.b16 %v1237
      %v1533 = vunpack.c.l.b16 %v1238
      %v1534 = vunpack.c.l.b16 %v1239
      %v1535 = vunpack.c.l.b16 %v1240
      %v1536 = vunpack.c.l.b16 %v1241
      %v1537 = vunpack.c.l.b16 %v1242
      %v1538 = vunpack.c.l.b16 %v1243
      %v1539 = vunpack.c.l.b16 %v1244
      %v1540 = vunpack.c.l.b16 %v1245
      %v1541 = vunpack.c.l.b16 %v1246
      %v1542 = vunpack.c.l.b16 %v1247
      %v1543 = vunpack.c.l.b16 %v1248
      %v1544 = vpack.c.b16 %v1401, %v1400
      %v1545 = vpack.c.b16 %v1403, %v1402
      %v1546 = vpack.c.b16 %v1405, %v1404
      %v1547 = vpack.c.b16 %v1407, %v1406
      %v1548 = vpack.c.b16 %v1409, %v1408
      %v1549 = vpack.c.b16 %v1411, %v1410
      %v1550 = vpack.c.b16 %v1413, %v1412
      %v1551 = vpack.c.b16 %v1415, %v1414
      %v1552 = vpack.c.b16 %v1417, %v1416
      %v1553 = vpack.c.b16 %v1419, %v1418
      %v1554 = vpack.c.b16 %v1421, %v1420
      %v1555 = vpack.c.b16 %v1423, %v1422
      %v1556 = vpack.c.b16 %v1425, %v1424
      %v1557 = vpack.c.b16 %v1427, %v1426
      %v1558 = vpack.c.b16 %v1429, %v1428
      %v1559 = vpack.c.b16 %v1431, %v1430
      %v1560 = vpack.c.b16 %v1433, %v1432
      %v1561 = vpack.c.b16 %v1435, %v1434
      %v1562 = vpack.c.b16 %v1437, %v1436
      %v1563 = vpack.c.b16 %v1439, %v1438
      %v1564 = vpack.c.b16 %v1441, %v1440
      %v1565 = vpack.c.b16 %v1443, %v1442
      %v1566 = vpack.c.b16 %v1445, %v1444
      %v1567 = vpack.c.b16 %v1447, %v1446
      %v1568 = vpack.c.b16 %v1449, %v1448
      %v1569 = vpack.c.b16 %v1451, %v1450
      %v1570 = vpack.c.b16 %v1453, %v1452
      %v1571 = vpack.c.b16 %v1455, %v1454
      %v1572 = vpack.c.b16 %v1457, %v1456
      %v1573 = vpack.c.b16 %v1459, %v1458
      %v1574 = vpack.c.b16 %v1461, %v1460
      %v1575 = vpack.c.b16 %v1463, %v1462
      %v1576 = vpack.c.b16 %v1465, %v1464
      %v1577 = vpack.c.b16 %v1467, %v1466
      %v1578 = vpack.c.b16 %v1469, %v1468
      %v1579 = vpack.c.b16 %v1471, %v1470
      %v1580 = vpack.c.b16 %v1473, %v1472
      %v1581 = vpack.c.b16 %v1475, %v1474
      %v1582 = vpack.c.b16 %v1477, %v1476
      %v1583 = vpack.c.b16 %v1479, %v1478
      %v1584 = vpack.c.b16 %v1481, %v1480
      %v1585 = vpack.c.b16 %v1483, %v1482
      %v1586 = vpack.c.b16 %v1485, %v1484
      %v1587 = vpack.c.b16 %v1487, %v1486
      %v1588 = vpack.c.b16 %v1489, %v1488
      %v1589 = vpack.c.b16 %v1491, %v1490
      %v1590 = vpack.c.b16 %v1493, %v1492
      %v1591 = vpack.c.b16 %v1495, %v1494
      %v1592 = vpack.c.b16 %v1497, %v1496
      %v1593 = vpack.c.b16 %v1499, %v1498
      %v1594 = vpack.c.b16 %v1501, %v1500
      %v1595 = vpack.c.b16 %v1503, %v1502
      %v1596 = vpack.c.b16 %v1505, %v1504
      %v1597 = vpack.c.b16 %v1507, %v1506
      %v1598 = vpack.c.b16 %v1509, %v1508
      %v1599 = vpack.c.b16 %v1511, %v1510
      %v1600 = vpack.c.b16 %v1513, %v1512
      %v1601 = vpack.c.b16 %v1515, %v1514
      %v1602 = vpack.c.b16 %v1517, %v1516
      %v1603 = vpack.c.b16 %v1519, %v1518
      %v1604 = vpack.c.b16 %v1521, %v1520
      %v1605 = vpack.c.b16 %v1523, %v1522
      %v1606 = vpack.c.b16 %v1525, %v1524
      %v1607 = vpack.c.b16 %v1527, %v1526
      %v1608 = vpack.c.b16 %v1529, %v1528
      %v1609 = vpack.c.b16 %v1531, %v1530
      %v1610 = vpack.c.b16 %v1533, %v1532
      %v1611 = vpack.c.b16 %v1535, %v1534
      %v1612 = vpack.c.b16 %v1537, %v1536
      %v1613 = vpack.c.b16 %v1539, %v1538
      %v1614 = vpack.c.b16 %v1541, %v1540
      %v1615 = vpack.c.b16 %v1543, %v1542
      %1688 = vmatprep.subr.bf16.mxu0 0
      %1689 = vmatpush1.bf16.msra.mxu0 %v1551
      %1690 = vmatprep.subr.bf16.mxu0 0
      %1691 = vmatpush1.bf16.msra.mxu0 %v1550
      %1692 = vmatprep.subr.bf16.mxu0 0
      %1693 = vmatpush1.bf16.msra.mxu0 %v1549
      %1694 = vmatprep.subr.bf16.mxu0 0
      %1695 = vmatpush1.bf16.msra.mxu0 %v1548
      %1696 = vmatprep.subr.bf16.mxu0 0
      %1697 = vmatpush1.bf16.msra.mxu0 %v1547
      %1698 = vmatprep.subr.bf16.mxu0 0
      %1699 = vmatpush1.bf16.msra.mxu0 %v1546
      %1700 = vmatprep.subr.bf16.mxu0 0
      %1701 = vmatpush1.bf16.msra.mxu0 %v1545
      %1702 = vmatprep.subr.bf16.mxu0 0
      %1703 = vmatpush1.bf16.msra.mxu0 %v1544
      %1704 = vmatprep.subr.bf16.mxu0 0
      %1705 = vmatpush2.bf16.msra.mxu0 %v1559
      %1706 = vmatprep.subr.bf16.mxu0 0
      %1707 = vmatpush2.bf16.msra.mxu0 %v1558
      %1708 = vmatprep.subr.bf16.mxu0 0
      %1709 = vmatpush2.bf16.msra.mxu0 %v1557
      %1710 = vmatprep.subr.bf16.mxu0 0
      %1711 = vmatpush2.bf16.msra.mxu0 %v1556
      %1712 = vmatprep.subr.bf16.mxu0 0
      %1713 = vmatpush2.bf16.msra.mxu0 %v1555
      %1714 = vmatprep.subr.bf16.mxu0 0
      %1715 = vmatpush2.bf16.msra.mxu0 %v1554
      %1716 = vmatprep.subr.bf16.mxu0 0
      %1717 = vmatpush2.bf16.msra.mxu0 %v1553
      %1718 = vmatprep.subr.bf16.mxu0 0
      %1719 = vmatpush2.bf16.msra.mxu0 %v1552
      %1720 = vmatprep.mubr.bf16.mxu0 %v960
      %1721 = vmatmul.mubr.bf16.gmra.mxu0 %v942
      %v1722 = vpop.f32.mrf.mxu0
      %v1723 = vadd.f32 %v1254, %v1722
      %v1724 = vpop.f32.mrf.mxu0
      %v1725 = vpop.f32.mrf.mxu0
      %v1726 = vadd.f32 %v1254, %v1725
      %v1727 = vpop.f32.mrf.mxu0
      %1728 = vmatprep.mubr.bf16.mxu0 %v961
      %1729 = vmatmul.mubr.bf16.gmra.mxu0 %v943
      %v1730 = vpop.f32.mrf.mxu0
      %v1731 = vadd.f32 %v1254, %v1730
      %v1732 = vpop.f32.mrf.mxu0
      %v1733 = vpop.f32.mrf.mxu0
      %v1734 = vadd.f32 %v1254, %v1733
      %v1735 = vpop.f32.mrf.mxu0
      %1736 = vmatprep.mubr.bf16.mxu0 %v962
      %1737 = vmatmul.mubr.bf16.gmra.mxu0 %v944
      %v1738 = vpop.f32.mrf.mxu0
      %v1739 = vadd.f32 %v1254, %v1738
      %v1740 = vpop.f32.mrf.mxu0
      %v1741 = vpop.f32.mrf.mxu0
      %v1742 = vadd.f32 %v1254, %v1741
      %v1743 = vpop.f32.mrf.mxu0
      %1744 = vmatprep.mubr.bf16.mxu0 %v963
      %1745 = vmatmul.mubr.bf16.gmra.mxu0 %v945
      %v1746 = vpop.f32.mrf.mxu0
      %v1747 = vadd.f32 %v1254, %v1746
      %v1748 = vpop.f32.mrf.mxu0
      %v1749 = vpop.f32.mrf.mxu0
      %v1750 = vadd.f32 %v1254, %v1749
      %v1751 = vpop.f32.mrf.mxu0
      %1752 = vmatprep.mubr.bf16.mxu0 %v964
      %1753 = vmatmul.mubr.bf16.gmra.mxu0 %v946
      %v1754 = vpop.f32.mrf.mxu0
      %v1755 = vadd.f32 %v1254, %v1754
      %v1756 = vpop.f32.mrf.mxu0
      %v1757 = vpop.f32.mrf.mxu0
      %v1758 = vadd.f32 %v1254, %v1757
      %v1759 = vpop.f32.mrf.mxu0
      %1760 = vmatprep.mubr.bf16.mxu0 %v965
      %1761 = vmatmul.mubr.bf16.gmra.mxu0 %v947
      %v1762 = vpop.f32.mrf.mxu0
      %v1763 = vadd.f32 %v1254, %v1762
      %v1764 = vpop.f32.mrf.mxu0
      %v1765 = vpop.f32.mrf.mxu0
      %v1766 = vadd.f32 %v1254, %v1765
      %v1767 = vpop.f32.mrf.mxu0
      %1768 = vmatprep.mubr.bf16.mxu0 %v966
      %1769 = vmatmul.mubr.bf16.gmra.mxu0 %v948
      %v1770 = vpop.f32.mrf.mxu0
      %v1771 = vadd.f32 %v1254, %v1770
      %v1772 = vpop.f32.mrf.mxu0
      %v1773 = vpop.f32.mrf.mxu0
      %v1774 = vadd.f32 %v1254, %v1773
      %v1775 = vpop.f32.mrf.mxu0
      %1776 = vmatprep.mubr.bf16.mxu0 %v967
      %1777 = vmatmul.mubr.bf16.gmra.mxu0 %v949
      %v1778 = vpop.f32.mrf.mxu0
      %v1779 = vadd.f32 %v1254, %v1778
      %v1780 = vpop.f32.mrf.mxu0
      %v1781 = vpop.f32.mrf.mxu0
      %v1782 = vadd.f32 %v1254, %v1781
      %v1783 = vpop.f32.mrf.mxu0
      %1784 = vmatprep.mubr.bf16.mxu0 %v968
      %1785 = vmatmul.mubr.bf16.gmra.mxu0 %v950
      %v1786 = vpop.f32.mrf.mxu0
      %v1787 = vadd.f32 %v1254, %v1786
      %v1788 = vpop.f32.mrf.mxu0
      %v1789 = vpop.f32.mrf.mxu0
      %v1790 = vadd.f32 %v1254, %v1789
      %v1791 = vpop.f32.mrf.mxu0
      %1792 = vmatprep.mubr.bf16.mxu0 %v969
      %1793 = vmatmul.mubr.bf16.gmra.mxu0 %v951
      %v1794 = vpop.f32.mrf.mxu0
      %v1795 = vadd.f32 %v1254, %v1794
      %v1796 = vpop.f32.mrf.mxu0
      %v1797 = vpop.f32.mrf.mxu0
      %v1798 = vadd.f32 %v1254, %v1797
      %v1799 = vpop.f32.mrf.mxu0
      %1800 = vmatprep.mubr.bf16.mxu0 %v970
      %1801 = vmatmul.mubr.bf16.gmra.mxu0 %v952
      %v1802 = vpop.f32.mrf.mxu0
      %v1803 = vadd.f32 %v1254, %v1802
      %v1804 = vpop.f32.mrf.mxu0
      %v1805 = vpop.f32.mrf.mxu0
      %v1806 = vadd.f32 %v1254, %v1805
      %v1807 = vpop.f32.mrf.mxu0
      %1808 = vmatprep.mubr.bf16.mxu0 %v971
      %1809 = vmatmul.mubr.bf16.gmra.mxu0 %v953
      %v1810 = vpop.f32.mrf.mxu0
      %v1811 = vadd.f32 %v1254, %v1810
      %v1812 = vpop.f32.mrf.mxu0
      %v1813 = vpop.f32.mrf.mxu0
      %v1814 = vadd.f32 %v1254, %v1813
      %v1815 = vpop.f32.mrf.mxu0
      %1816 = vmatprep.mubr.bf16.mxu0 %v972
      %1817 = vmatmul.mubr.bf16.gmra.mxu0 %v954
      %v1818 = vpop.f32.mrf.mxu0
      %v1819 = vadd.f32 %v1254, %v1818
      %v1820 = vpop.f32.mrf.mxu0
      %v1821 = vpop.f32.mrf.mxu0
      %v1822 = vadd.f32 %v1254, %v1821
      %v1823 = vpop.f32.mrf.mxu0
      %1824 = vmatprep.mubr.bf16.mxu0 %v973
      %1825 = vmatmul.mubr.bf16.gmra.mxu0 %v955
      %v1826 = vpop.f32.mrf.mxu0
      %v1827 = vadd.f32 %v1254, %v1826
      %v1828 = vpop.f32.mrf.mxu0
      %v1829 = vpop.f32.mrf.mxu0
      %v1830 = vadd.f32 %v1254, %v1829
      %v1831 = vpop.f32.mrf.mxu0
      %1832 = vmatprep.mubr.bf16.mxu0 %v974
      %1833 = vmatmul.mubr.bf16.gmra.mxu0 %v956
      %v1834 = vpop.f32.mrf.mxu0
      %v1835 = vadd.f32 %v1254, %v1834
      %v1836 = vpop.f32.mrf.mxu0
      %v1837 = vpop.f32.mrf.mxu0
      %v1838 = vadd.f32 %v1254, %v1837
      %v1839 = vpop.f32.mrf.mxu0
      %1840 = vmatprep.mubr.bf16.mxu0 %v975
      %1841 = vmatmul.mubr.bf16.gmra.mxu0 %v957
      %v1842 = vpop.f32.mrf.mxu0
      %v1843 = vadd.f32 %v1254, %v1842
      %v1844 = vpop.f32.mrf.mxu0
      %v1845 = vpop.f32.mrf.mxu0
      %v1846 = vadd.f32 %v1254, %v1845
      %v1847 = vpop.f32.mrf.mxu0
      %1848 = vdwg.mxu0
      %1849 = vmatprep.subr.bf16.mxu0 0
      %1850 = vmatpush1.bf16.msra.mxu0 %v1567
      %1851 = vmatprep.subr.bf16.mxu0 0
      %1852 = vmatpush1.bf16.msra.mxu0 %v1566
      %1853 = vmatprep.subr.bf16.mxu0 0
      %1854 = vmatpush1.bf16.msra.mxu0 %v1565
      %1855 = vmatprep.subr.bf16.mxu0 0
      %1856 = vmatpush1.bf16.msra.mxu0 %v1564
      %1857 = vmatprep.subr.bf16.mxu0 0
      %1858 = vmatpush1.bf16.msra.mxu0 %v1563
      %1859 = vmatprep.subr.bf16.mxu0 0
      %1860 = vmatpush1.bf16.msra.mxu0 %v1562
      %1861 = vmatprep.subr.bf16.mxu0 0
      %1862 = vmatpush1.bf16.msra.mxu0 %v1561
      %1863 = vmatprep.subr.bf16.mxu0 0
      %1864 = vmatpush1.bf16.msra.mxu0 %v1560
      %1865 = vmatprep.subr.bf16.mxu0 0
      %1866 = vmatpush2.bf16.msra.mxu0 %v1575
      %1867 = vmatprep.subr.bf16.mxu0 0
      %1868 = vmatpush2.bf16.msra.mxu0 %v1574
      %1869 = vmatprep.subr.bf16.mxu0 0
      %1870 = vmatpush2.bf16.msra.mxu0 %v1573
      %1871 = vmatprep.subr.bf16.mxu0 0
      %1872 = vmatpush2.bf16.msra.mxu0 %v1572
      %1873 = vmatprep.subr.bf16.mxu0 0
      %1874 = vmatpush2.bf16.msra.mxu0 %v1571
      %1875 = vmatprep.subr.bf16.mxu0 0
      %1876 = vmatpush2.bf16.msra.mxu0 %v1570
      %1877 = vmatprep.subr.bf16.mxu0 0
      %1878 = vmatpush2.bf16.msra.mxu0 %v1569
      %1879 = vmatprep.subr.bf16.mxu0 0
      %1880 = vmatpush2.bf16.msra.mxu0 %v1568
      %1881 = vmatprep.mubr.bf16.mxu0 %v943
      %1882 = vmatmul.mubr.bf16.gmra.mxu0 %v1087
      %v1883 = vpop.f32.mrf.mxu0
      %v1884 = vadd.f32 %v1723, %v1883
      %v1885 = vpop.f32.mrf.mxu0
      %v1886 = vpop.f32.mrf.mxu0
      %v1887 = vadd.f32 %v1726, %v1886
      %v1888 = vpop.f32.mrf.mxu0
      %1889 = vmatprep.mubr.bf16.mxu0 %v944
      %1890 = vmatmul.mubr.bf16.gmra.mxu0 %v1088
      %v1891 = vpop.f32.mrf.mxu0
      %v1892 = vadd.f32 %v1731, %v1891
      %v1893 = vpop.f32.mrf.mxu0
      %v1894 = vpop.f32.mrf.mxu0
      %v1895 = vadd.f32 %v1734, %v1894
      %v1896 = vpop.f32.mrf.mxu0
      %1897 = vmatprep.mubr.bf16.mxu0 %v945
      %1898 = vmatmul.mubr.bf16.gmra.mxu0 %v1089
      %v1899 = vpop.f32.mrf.mxu0
      %v1900 = vadd.f32 %v1739, %v1899
      %v1901 = vpop.f32.mrf.mxu0
      %v1902 = vpop.f32.mrf.mxu0
      %v1903 = vadd.f32 %v1742, %v1902
      %v1904 = vpop.f32.mrf.mxu0
      %1905 = vmatprep.mubr.bf16.mxu0 %v946
      %1906 = vmatmul.mubr.bf16.gmra.mxu0 %v1090
      %v1907 = vpop.f32.mrf.mxu0
      %v1908 = vadd.f32 %v1747, %v1907
      %v1909 = vpop.f32.mrf.mxu0
      %v1910 = vpop.f32.mrf.mxu0
      %v1911 = vadd.f32 %v1750, %v1910
      %v1912 = vpop.f32.mrf.mxu0
      %1913 = vmatprep.mubr.bf16.mxu0 %v947
      %1914 = vmatmul.mubr.bf16.gmra.mxu0 %v1091
      %v1915 = vpop.f32.mrf.mxu0
      %v1916 = vadd.f32 %v1755, %v1915
      %v1917 = vpop.f32.mrf.mxu0
      %v1918 = vpop.f32.mrf.mxu0
      %v1919 = vadd.f32 %v1758, %v1918
      %v1920 = vpop.f32.mrf.mxu0
      %1921 = vmatprep.mubr.bf16.mxu0 %v948
      %1922 = vmatmul.mubr.bf16.gmra.mxu0 %v1092
      %v1923 = vpop.f32.mrf.mxu0
      %v1924 = vadd.f32 %v1763, %v1923
      %v1925 = vpop.f32.mrf.mxu0
      %v1926 = vpop.f32.mrf.mxu0
      %v1927 = vadd.f32 %v1766, %v1926
      %v1928 = vpop.f32.mrf.mxu0
      %1929 = vmatprep.mubr.bf16.mxu0 %v949
      %1930 = vmatmul.mubr.bf16.gmra.mxu0 %v1093
      %v1931 = vpop.f32.mrf.mxu0
      %v1932 = vadd.f32 %v1771, %v1931
      %v1933 = vpop.f32.mrf.mxu0
      %v1934 = vpop.f32.mrf.mxu0
      %v1935 = vadd.f32 %v1774, %v1934
      %v1936 = vpop.f32.mrf.mxu0
      %1937 = vmatprep.mubr.bf16.mxu0 %v950
      %1938 = vmatmul.mubr.bf16.gmra.mxu0 %v1094
      %v1939 = vpop.f32.mrf.mxu0
      %v1940 = vadd.f32 %v1779, %v1939
      %v1941 = vpop.f32.mrf.mxu0
      %v1942 = vpop.f32.mrf.mxu0
      %v1943 = vadd.f32 %v1782, %v1942
      %v1944 = vpop.f32.mrf.mxu0
      %1945 = vmatprep.mubr.bf16.mxu0 %v951
      %1946 = vmatmul.mubr.bf16.gmra.mxu0 %v1095
      %v1947 = vpop.f32.mrf.mxu0
      %v1948 = vadd.f32 %v1787, %v1947
      %v1949 = vpop.f32.mrf.mxu0
      %v1950 = vpop.f32.mrf.mxu0
      %v1951 = vadd.f32 %v1790, %v1950
      %v1952 = vpop.f32.mrf.mxu0
      %1953 = vmatprep.mubr.bf16.mxu0 %v952
      %1954 = vmatmul.mubr.bf16.gmra.mxu0 %v1096
      %v1955 = vpop.f32.mrf.mxu0
      %v1956 = vadd.f32 %v1795, %v1955
      %v1957 = vpop.f32.mrf.mxu0
      %v1958 = vpop.f32.mrf.mxu0
      %v1959 = vadd.f32 %v1798, %v1958
      %v1960 = vpop.f32.mrf.mxu0
      %1961 = vmatprep.mubr.bf16.mxu0 %v953
      %1962 = vmatmul.mubr.bf16.gmra.mxu0 %v1097
      %v1963 = vpop.f32.mrf.mxu0
      %v1964 = vadd.f32 %v1803, %v1963
      %v1965 = vpop.f32.mrf.mxu0
      %v1966 = vpop.f32.mrf.mxu0
      %v1967 = vadd.f32 %v1806, %v1966
      %v1968 = vpop.f32.mrf.mxu0
      %1969 = vmatprep.mubr.bf16.mxu0 %v954
      %1970 = vmatmul.mubr.bf16.gmra.mxu0 %v1098
      %v1971 = vpop.f32.mrf.mxu0
      %v1972 = vadd.f32 %v1811, %v1971
      %v1973 = vpop.f32.mrf.mxu0
      %v1974 = vpop.f32.mrf.mxu0
      %v1975 = vadd.f32 %v1814, %v1974
      %v1976 = vpop.f32.mrf.mxu0
      %1977 = vmatprep.mubr.bf16.mxu0 %v955
      %1978 = vmatmul.mubr.bf16.gmra.mxu0 %v1099
      %v1979 = vpop.f32.mrf.mxu0
      %v1980 = vadd.f32 %v1819, %v1979
      %v1981 = vpop.f32.mrf.mxu0
      %v1982 = vpop.f32.mrf.mxu0
      %v1983 = vadd.f32 %v1822, %v1982
      %v1984 = vpop.f32.mrf.mxu0
      %1985 = vmatprep.mubr.bf16.mxu0 %v956
      %1986 = vmatmul.mubr.bf16.gmra.mxu0 %v1100
      %v1987 = vpop.f32.mrf.mxu0
      %v1988 = vadd.f32 %v1827, %v1987
      %v1989 = vpop.f32.mrf.mxu0
      %v1990 = vpop.f32.mrf.mxu0
      %v1991 = vadd.f32 %v1830, %v1990
      %v1992 = vpop.f32.mrf.mxu0
      %1993 = vmatprep.mubr.bf16.mxu0 %v957
      %1994 = vmatmul.mubr.bf16.gmra.mxu0 %v1101
      %v1995 = vpop.f32.mrf.mxu0
      %v1996 = vadd.f32 %v1835, %v1995
      %v1997 = vpop.f32.mrf.mxu0
      %v1998 = vpop.f32.mrf.mxu0
      %v1999 = vadd.f32 %v1838, %v1998
      %v2000 = vpop.f32.mrf.mxu0
      %2001 = vmatprep.mubr.bf16.mxu0 %v958
      %2002 = vmatmul.mubr.bf16.gmra.mxu0 %v1102
      %v2003 = vpop.f32.mrf.mxu0
      %v2004 = vadd.f32 %v1843, %v2003
      %v2005 = vpop.f32.mrf.mxu0
      %v2006 = vpop.f32.mrf.mxu0
      %v2007 = vadd.f32 %v1846, %v2006
      %v2008 = vpop.f32.mrf.mxu0
      %2009 = vdwg.mxu0
      %2010 = vmatprep.subr.bf16.mxu0 0
      %2011 = vmatpush1.bf16.msra.mxu0 %v1583
      %2012 = vmatprep.subr.bf16.mxu0 0
      %2013 = vmatpush1.bf16.msra.mxu0 %v1582
      %2014 = vmatprep.subr.bf16.mxu0 0
      %2015 = vmatpush1.bf16.msra.mxu0 %v1581
      %2016 = vmatprep.subr.bf16.mxu0 0
      %2017 = vmatpush1.bf16.msra.mxu0 %v1580
      %2018 = vmatprep.subr.bf16.mxu0 0
      %2019 = vmatpush1.bf16.msra.mxu0 %v1579
      %2020 = vmatprep.subr.bf16.mxu0 0
      %2021 = vmatpush1.bf16.msra.mxu0 %v1578
      %2022 = vmatprep.subr.bf16.mxu0 0
      %2023 = vmatpush1.bf16.msra.mxu0 %v1577
      %2024 = vmatprep.subr.bf16.mxu0 0
      %2025 = vmatpush1.bf16.msra.mxu0 %v1576
      %2026 = vmatprep.subr.bf16.mxu0 0
      %2027 = vmatpush2.bf16.msra.mxu0 %v1591
      %2028 = vmatprep.subr.bf16.mxu0 0
      %2029 = vmatpush2.bf16.msra.mxu0 %v1590
      %2030 = vmatprep.subr.bf16.mxu0 0
      %2031 = vmatpush2.bf16.msra.mxu0 %v1589
      %2032 = vmatprep.subr.bf16.mxu0 0
      %2033 = vmatpush2.bf16.msra.mxu0 %v1588
      %2034 = vmatprep.subr.bf16.mxu0 0
      %2035 = vmatpush2.bf16.msra.mxu0 %v1587
      %2036 = vmatprep.subr.bf16.mxu0 0
      %2037 = vmatpush2.bf16.msra.mxu0 %v1586
      %2038 = vmatprep.subr.bf16.mxu0 0
      %2039 = vmatpush2.bf16.msra.mxu0 %v1585
      %2040 = vmatprep.subr.bf16.mxu0 0
      %2041 = vmatpush2.bf16.msra.mxu0 %v1584
      %2042 = vmatprep.mubr.bf16.mxu0 %v1088
      %2043 = vmatmul.mubr.bf16.gmra.mxu0 %v961
      %v2044 = vpop.f32.mrf.mxu0
      %v2045 = vadd.f32 %v1884, %v2044
      %v2046 = vpop.f32.mrf.mxu0
      %v2047 = vpop.f32.mrf.mxu0
      %v2048 = vadd.f32 %v1887, %v2047
      %v2049 = vpop.f32.mrf.mxu0
      %2050 = vmatprep.mubr.bf16.mxu0 %v1089
      %2051 = vmatmul.mubr.bf16.gmra.mxu0 %v962
      %v2052 = vpop.f32.mrf.mxu0
      %v2053 = vadd.f32 %v1892, %v2052
      %v2054 = vpop.f32.mrf.mxu0
      %v2055 = vpop.f32.mrf.mxu0
      %v2056 = vadd.f32 %v1895, %v2055
      %v2057 = vpop.f32.mrf.mxu0
      %2058 = vmatprep.mubr.bf16.mxu0 %v1090
      %2059 = vmatmul.mubr.bf16.gmra.mxu0 %v963
      %v2060 = vpop.f32.mrf.mxu0
      %v2061 = vadd.f32 %v1900, %v2060
      %v2062 = vpop.f32.mrf.mxu0
      %v2063 = vpop.f32.mrf.mxu0
      %v2064 = vadd.f32 %v1903, %v2063
      %v2065 = vpop.f32.mrf.mxu0
      %2066 = vmatprep.mubr.bf16.mxu0 %v1091
      %2067 = vmatmul.mubr.bf16.gmra.mxu0 %v964
      %v2068 = vpop.f32.mrf.mxu0
      %v2069 = vadd.f32 %v1908, %v2068
      %v2070 = vpop.f32.mrf.mxu0
      %v2071 = vpop.f32.mrf.mxu0
      %v2072 = vadd.f32 %v1911, %v2071
      %v2073 = vpop.f32.mrf.mxu0
      %2074 = vmatprep.mubr.bf16.mxu0 %v1092
      %2075 = vmatmul.mubr.bf16.gmra.mxu0 %v965
      %v2076 = vpop.f32.mrf.mxu0
      %v2077 = vadd.f32 %v1916, %v2076
      %v2078 = vpop.f32.mrf.mxu0
      %v2079 = vpop.f32.mrf.mxu0
      %v2080 = vadd.f32 %v1919, %v2079
      %v2081 = vpop.f32.mrf.mxu0
      %2082 = vmatprep.mubr.bf16.mxu0 %v1093
      %2083 = vmatmul.mubr.bf16.gmra.mxu0 %v966
      %v2084 = vpop.f32.mrf.mxu0
      %v2085 = vadd.f32 %v1924, %v2084
      %v2086 = vpop.f32.mrf.mxu0
      %v2087 = vpop.f32.mrf.mxu0
      %v2088 = vadd.f32 %v1927, %v2087
      %v2089 = vpop.f32.mrf.mxu0
      %2090 = vmatprep.mubr.bf16.mxu0 %v1094
      %2091 = vmatmul.mubr.bf16.gmra.mxu0 %v967
      %v2092 = vpop.f32.mrf.mxu0
      %v2093 = vadd.f32 %v1932, %v2092
      %v2094 = vpop.f32.mrf.mxu0
      %v2095 = vpop.f32.mrf.mxu0
      %v2096 = vadd.f32 %v1935, %v2095
      %v2097 = vpop.f32.mrf.mxu0
      %2098 = vmatprep.mubr.bf16.mxu0 %v1095
      %2099 = vmatmul.mubr.bf16.gmra.mxu0 %v968
      %v2100 = vpop.f32.mrf.mxu0
      %v2101 = vadd.f32 %v1940, %v2100
      %v2102 = vpop.f32.mrf.mxu0
      %v2103 = vpop.f32.mrf.mxu0
      %v2104 = vadd.f32 %v1943, %v2103
      %v2105 = vpop.f32.mrf.mxu0
      %2106 = vmatprep.mubr.bf16.mxu0 %v1096
      %2107 = vmatmul.mubr.bf16.gmra.mxu0 %v969
      %v2108 = vpop.f32.mrf.mxu0
      %v2109 = vadd.f32 %v1948, %v2108
      %v2110 = vpop.f32.mrf.mxu0
      %v2111 = vpop.f32.mrf.mxu0
      %v2112 = vadd.f32 %v1951, %v2111
      %v2113 = vpop.f32.mrf.mxu0
      %2114 = vmatprep.mubr.bf16.mxu0 %v1097
      %2115 = vmatmul.mubr.bf16.gmra.mxu0 %v970
      %v2116 = vpop.f32.mrf.mxu0
      %v2117 = vadd.f32 %v1956, %v2116
      %v2118 = vpop.f32.mrf.mxu0
      %v2119 = vpop.f32.mrf.mxu0
      %v2120 = vadd.f32 %v1959, %v2119
      %v2121 = vpop.f32.mrf.mxu0
      %2122 = vmatprep.mubr.bf16.mxu0 %v1098
      %2123 = vmatmul.mubr.bf16.gmra.mxu0 %v971
      %v2124 = vpop.f32.mrf.mxu0
      %v2125 = vadd.f32 %v1964, %v2124
      %v2126 = vpop.f32.mrf.mxu0
      %v2127 = vpop.f32.mrf.mxu0
      %v2128 = vadd.f32 %v1967, %v2127
      %v2129 = vpop.f32.mrf.mxu0
      %2130 = vmatprep.mubr.bf16.mxu0 %v1099
      %2131 = vmatmul.mubr.bf16.gmra.mxu0 %v972
      %v2132 = vpop.f32.mrf.mxu0
      %v2133 = vadd.f32 %v1972, %v2132
      %v2134 = vpop.f32.mrf.mxu0
      %v2135 = vpop.f32.mrf.mxu0
      %v2136 = vadd.f32 %v1975, %v2135
      %v2137 = vpop.f32.mrf.mxu0
      %2138 = vmatprep.mubr.bf16.mxu0 %v1100
      %2139 = vmatmul.mubr.bf16.gmra.mxu0 %v973
      %v2140 = vpop.f32.mrf.mxu0
      %v2141 = vadd.f32 %v1980, %v2140
      %v2142 = vpop.f32.mrf.mxu0
      %v2143 = vpop.f32.mrf.mxu0
      %v2144 = vadd.f32 %v1983, %v2143
      %v2145 = vpop.f32.mrf.mxu0
      %2146 = vmatprep.mubr.bf16.mxu0 %v1101
      %2147 = vmatmul.mubr.bf16.gmra.mxu0 %v974
      %v2148 = vpop.f32.mrf.mxu0
      %v2149 = vadd.f32 %v1988, %v2148
      %v2150 = vpop.f32.mrf.mxu0
      %v2151 = vpop.f32.mrf.mxu0
      %v2152 = vadd.f32 %v1991, %v2151
      %v2153 = vpop.f32.mrf.mxu0
      %2154 = vmatprep.mubr.bf16.mxu0 %v1102
      %2155 = vmatmul.mubr.bf16.gmra.mxu0 %v975
      %v2156 = vpop.f32.mrf.mxu0
      %v2157 = vadd.f32 %v1996, %v2156
      %v2158 = vpop.f32.mrf.mxu0
      %v2159 = vpop.f32.mrf.mxu0
      %v2160 = vadd.f32 %v1999, %v2159
      %v2161 = vpop.f32.mrf.mxu0
      %2162 = vmatprep.mubr.bf16.mxu0 %v1103
      %2163 = vmatmul.mubr.bf16.gmra.mxu0 %v976
      %v2164 = vpop.f32.mrf.mxu0
      %v2165 = vadd.f32 %v2004, %v2164
      %v2166 = vpop.f32.mrf.mxu0
      %v2167 = vpop.f32.mrf.mxu0
      %v2168 = vadd.f32 %v2007, %v2167
      %v2169 = vpop.f32.mrf.mxu0
      %2170 = vdwg.mxu0
      %2171 = vmatprep.subr.bf16.mxu0 0
      %2172 = vmatpush1.bf16.msra.mxu0 %v1599
      %2173 = vmatprep.subr.bf16.mxu0 0
      %2174 = vmatpush1.bf16.msra.mxu0 %v1598
      %2175 = vmatprep.subr.bf16.mxu0 0
      %2176 = vmatpush1.bf16.msra.mxu0 %v1597
      %2177 = vmatprep.subr.bf16.mxu0 0
      %2178 = vmatpush1.bf16.msra.mxu0 %v1596
      %2179 = vmatprep.subr.bf16.mxu0 0
      %2180 = vmatpush1.bf16.msra.mxu0 %v1595
      %2181 = vmatprep.subr.bf16.mxu0 0
      %2182 = vmatpush1.bf16.msra.mxu0 %v1594
      %2183 = vmatprep.subr.bf16.mxu0 0
      %2184 = vmatpush1.bf16.msra.mxu0 %v1593
      %2185 = vmatprep.subr.bf16.mxu0 0
      %2186 = vmatpush1.bf16.msra.mxu0 %v1592
      %2187 = vmatprep.subr.bf16.mxu0 0
      %2188 = vmatpush2.bf16.msra.mxu0 %v1607
      %2189 = vmatprep.subr.bf16.mxu0 0
      %2190 = vmatpush2.bf16.msra.mxu0 %v1606
      %2191 = vmatprep.subr.bf16.mxu0 0
      %2192 = vmatpush2.bf16.msra.mxu0 %v1605
      %2193 = vmatprep.subr.bf16.mxu0 0
      %2194 = vmatpush2.bf16.msra.mxu0 %v1604
      %2195 = vmatprep.subr.bf16.mxu0 0
      %2196 = vmatpush2.bf16.msra.mxu0 %v1603
      %2197 = vmatprep.subr.bf16.mxu0 0
      %2198 = vmatpush2.bf16.msra.mxu0 %v1602
      %2199 = vmatprep.subr.bf16.mxu0 0
      %2200 = vmatpush2.bf16.msra.mxu0 %v1601
      %2201 = vmatprep.subr.bf16.mxu0 0
      %2202 = vmatpush2.bf16.msra.mxu0 %v1600
      %2203 = vmatprep.mubr.bf16.mxu0 %v962
      %2204 = vmatmul.mubr.bf16.gmra.mxu0 %v944
      %v2205 = vpop.f32.mrf.mxu0
      %v2206 = vadd.f32 %v2045, %v2205
      %v2207 = vpop.f32.mrf.mxu0
      %v2208 = vpop.f32.mrf.mxu0
      %v2209 = vadd.f32 %v2048, %v2208
      %v2210 = vpop.f32.mrf.mxu0
      %2211 = vmatprep.mubr.bf16.mxu0 %v963
      %2212 = vmatmul.mubr.bf16.gmra.mxu0 %v945
      %v2213 = vpop.f32.mrf.mxu0
      %v2214 = vadd.f32 %v2053, %v2213
      %v2215 = vpop.f32.mrf.mxu0
      %v2216 = vpop.f32.mrf.mxu0
      %v2217 = vadd.f32 %v2056, %v2216
      %v2218 = vpop.f32.mrf.mxu0
      %2219 = vmatprep.mubr.bf16.mxu0 %v964
      %2220 = vmatmul.mubr.bf16.gmra.mxu0 %v946
      %v2221 = vpop.f32.mrf.mxu0
      %v2222 = vadd.f32 %v2061, %v2221
      %v2223 = vpop.f32.mrf.mxu0
      %v2224 = vpop.f32.mrf.mxu0
      %v2225 = vadd.f32 %v2064, %v2224
      %v2226 = vpop.f32.mrf.mxu0
      %2227 = vmatprep.mubr.bf16.mxu0 %v965
      %2228 = vmatmul.mubr.bf16.gmra.mxu0 %v947
      %v2229 = vpop.f32.mrf.mxu0
      %v2230 = vadd.f32 %v2069, %v2229
      %v2231 = vpop.f32.mrf.mxu0
      %v2232 = vpop.f32.mrf.mxu0
      %v2233 = vadd.f32 %v2072, %v2232
      %v2234 = vpop.f32.mrf.mxu0
      %2235 = vmatprep.mubr.bf16.mxu0 %v966
      %2236 = vmatmul.mubr.bf16.gmra.mxu0 %v948
      %v2237 = vpop.f32.mrf.mxu0
      %v2238 = vadd.f32 %v2077, %v2237
      %v2239 = vpop.f32.mrf.mxu0
      %v2240 = vpop.f32.mrf.mxu0
      %v2241 = vadd.f32 %v2080, %v2240
      %v2242 = vpop.f32.mrf.mxu0
      %2243 = vmatprep.mubr.bf16.mxu0 %v967
      %2244 = vmatmul.mubr.bf16.gmra.mxu0 %v949
      %v2245 = vpop.f32.mrf.mxu0
      %v2246 = vadd.f32 %v2085, %v2245
      %v2247 = vpop.f32.mrf.mxu0
      %v2248 = vpop.f32.mrf.mxu0
      %v2249 = vadd.f32 %v2088, %v2248
      %v2250 = vpop.f32.mrf.mxu0
      %2251 = vmatprep.mubr.bf16.mxu0 %v968
      %2252 = vmatmul.mubr.bf16.gmra.mxu0 %v950
      %v2253 = vpop.f32.mrf.mxu0
      %v2254 = vadd.f32 %v2093, %v2253
      %v2255 = vpop.f32.mrf.mxu0
      %v2256 = vpop.f32.mrf.mxu0
      %v2257 = vadd.f32 %v2096, %v2256
      %v2258 = vpop.f32.mrf.mxu0
      %2259 = vmatprep.mubr.bf16.mxu0 %v969
      %2260 = vmatmul.mubr.bf16.gmra.mxu0 %v951
      %v2261 = vpop.f32.mrf.mxu0
      %v2262 = vadd.f32 %v2101, %v2261
      %v2263 = vpop.f32.mrf.mxu0
      %v2264 = vpop.f32.mrf.mxu0
      %v2265 = vadd.f32 %v2104, %v2264
      %v2266 = vpop.f32.mrf.mxu0
      %2267 = vmatprep.mubr.bf16.mxu0 %v970
      %2268 = vmatmul.mubr.bf16.gmra.mxu0 %v952
      %v2269 = vpop.f32.mrf.mxu0
      %v2270 = vadd.f32 %v2109, %v2269
      %v2271 = vpop.f32.mrf.mxu0
      %v2272 = vpop.f32.mrf.mxu0
      %v2273 = vadd.f32 %v2112, %v2272
      %v2274 = vpop.f32.mrf.mxu0
      %2275 = vmatprep.mubr.bf16.mxu0 %v971
      %2276 = vmatmul.mubr.bf16.gmra.mxu0 %v953
      %v2277 = vpop.f32.mrf.mxu0
      %v2278 = vadd.f32 %v2117, %v2277
      %v2279 = vpop.f32.mrf.mxu0
      %v2280 = vpop.f32.mrf.mxu0
      %v2281 = vadd.f32 %v2120, %v2280
      %v2282 = vpop.f32.mrf.mxu0
      %2283 = vmatprep.mubr.bf16.mxu0 %v972
      %2284 = vmatmul.mubr.bf16.gmra.mxu0 %v954
      %v2285 = vpop.f32.mrf.mxu0
      %v2286 = vadd.f32 %v2125, %v2285
      %v2287 = vpop.f32.mrf.mxu0
      %v2288 = vpop.f32.mrf.mxu0
      %v2289 = vadd.f32 %v2128, %v2288
      %v2290 = vpop.f32.mrf.mxu0
      %2291 = vmatprep.mubr.bf16.mxu0 %v973
      %2292 = vmatmul.mubr.bf16.gmra.mxu0 %v955
      %v2293 = vpop.f32.mrf.mxu0
      %v2294 = vadd.f32 %v2133, %v2293
      %v2295 = vpop.f32.mrf.mxu0
      %v2296 = vpop.f32.mrf.mxu0
      %v2297 = vadd.f32 %v2136, %v2296
      %v2298 = vpop.f32.mrf.mxu0
      %2299 = vmatprep.mubr.bf16.mxu0 %v974
      %2300 = vmatmul.mubr.bf16.gmra.mxu0 %v956
      %v2301 = vpop.f32.mrf.mxu0
      %v2302 = vadd.f32 %v2141, %v2301
      %v2303 = vpop.f32.mrf.mxu0
      %v2304 = vpop.f32.mrf.mxu0
      %v2305 = vadd.f32 %v2144, %v2304
      %v2306 = vpop.f32.mrf.mxu0
      %2307 = vmatprep.mubr.bf16.mxu0 %v975
      %2308 = vmatmul.mubr.bf16.gmra.mxu0 %v957
      %v2309 = vpop.f32.mrf.mxu0
      %v2310 = vadd.f32 %v2149, %v2309
      %v2311 = vpop.f32.mrf.mxu0
      %v2312 = vpop.f32.mrf.mxu0
      %v2313 = vadd.f32 %v2152, %v2312
      %v2314 = vpop.f32.mrf.mxu0
      %2315 = vmatprep.mubr.bf16.mxu0 %v976
      %2316 = vmatmul.mubr.bf16.gmra.mxu0 %v958
      %v2317 = vpop.f32.mrf.mxu0
      %v2318 = vadd.f32 %v2157, %v2317
      %v2319 = vpop.f32.mrf.mxu0
      %v2320 = vpop.f32.mrf.mxu0
      %v2321 = vadd.f32 %v2160, %v2320
      %v2322 = vpop.f32.mrf.mxu0
      %2323 = vmatprep.mubr.bf16.mxu0 %v977
      %2324 = vmatmul.mubr.bf16.gmra.mxu0 %v959
      %v2325 = vpop.f32.mrf.mxu0
      %v2326 = vadd.f32 %v2165, %v2325
      %v2327 = vpop.f32.mrf.mxu0
      %v2328 = vpop.f32.mrf.mxu0
      %v2329 = vadd.f32 %v2168, %v2328
      %v2330 = vpop.f32.mrf.mxu0
      %2331 = vdwg.mxu0
      %2332 = vmatprep.subr.bf16.mxu0 0
      %2333 = vmatpush1.bf16.msra.mxu0 %v1615
      %2334 = vmatprep.subr.bf16.mxu0 0
      %2335 = vmatpush1.bf16.msra.mxu0 %v1614
      %2336 = vmatprep.subr.bf16.mxu0 0
      %2337 = vmatpush1.bf16.msra.mxu0 %v1613
      %2338 = vmatprep.subr.bf16.mxu0 0
      %2339 = vmatpush1.bf16.msra.mxu0 %v1612
      %2340 = vmatprep.subr.bf16.mxu0 0
      %2341 = vmatpush1.bf16.msra.mxu0 %v1611
      %2342 = vmatprep.subr.bf16.mxu0 0
      %2343 = vmatpush1.bf16.msra.mxu0 %v1610
      %2344 = vmatprep.subr.bf16.mxu0 0
      %2345 = vmatpush1.bf16.msra.mxu0 %v1609
      %2346 = vmatprep.subr.bf16.mxu0 0
      %2347 = vmatpush1.bf16.msra.mxu0 %v1608
      %2348 = vmatprep.subr.bf16.mxu0 0
      %2349 = vmatpush2.bf16.msra.mxu0 0
      %2350 = vmatprep.subr.bf16.mxu0 0
      %2351 = vmatpush2.bf16.msra.mxu0 0
      %2352 = vmatprep.subr.bf16.mxu0 0
      %2353 = vmatpush2.bf16.msra.mxu0 0
      %2354 = vmatprep.subr.bf16.mxu0 0
      %2355 = vmatpush2.bf16.msra.mxu0 0
      %2356 = vmatprep.subr.bf16.mxu0 0
      %2357 = vmatpush2.bf16.msra.mxu0 0
      %2358 = vmatprep.subr.bf16.mxu0 0
      %2359 = vmatpush2.bf16.msra.mxu0 0
      %2360 = vmatprep.subr.bf16.mxu0 0
      %2361 = vmatpush2.bf16.msra.mxu0 0
      %2362 = vmatprep.subr.bf16.mxu0 0
      %2363 = vmatpush2.bf16.msra.mxu0 0
      %2364 = vmatprep.mubr.bf16.mxu0 0
      %2365 = vmatmul.mubr.bf16.gmra.mxu0 %v1089
      %v2366 = vpop.f32.mrf.mxu0
      %v2367 = vadd.f32 %v2206, %v2366
      %v2368 = vpop.f32.mrf.mxu0
      %v2369 = vpop.f32.mrf.mxu0
      %v2370 = vadd.f32 %v2209, %v2369
      %v2371 = vpop.f32.mrf.mxu0
      %2372 = vmatprep.mubr.bf16.mxu0 0
      %2373 = vmatmul.mubr.bf16.gmra.mxu0 %v1090
      %v2374 = vpop.f32.mrf.mxu0
      %v2375 = vadd.f32 %v2214, %v2374
      %v2376 = vpop.f32.mrf.mxu0
      %v2377 = vpop.f32.mrf.mxu0
      %v2378 = vadd.f32 %v2217, %v2377
      %v2379 = vpop.f32.mrf.mxu0
      %2380 = vmatprep.mubr.bf16.mxu0 0
      %2381 = vmatmul.mubr.bf16.gmra.mxu0 %v1091
      %v2382 = vpop.f32.mrf.mxu0
      %v2383 = vadd.f32 %v2222, %v2382
      %v2384 = vpop.f32.mrf.mxu0
      %v2385 = vpop.f32.mrf.mxu0
      %v2386 = vadd.f32 %v2225, %v2385
      %v2387 = vpop.f32.mrf.mxu0
      %2388 = vmatprep.mubr.bf16.mxu0 0
      %2389 = vmatmul.mubr.bf16.gmra.mxu0 %v1092
      %v2390 = vpop.f32.mrf.mxu0
      %v2391 = vadd.f32 %v2230, %v2390
      %v2392 = vpop.f32.mrf.mxu0
      %v2393 = vpop.f32.mrf.mxu0
      %v2394 = vadd.f32 %v2233, %v2393
      %v2395 = vpop.f32.mrf.mxu0
      %2396 = vmatprep.mubr.bf16.mxu0 0
      %2397 = vmatmul.mubr.bf16.gmra.mxu0 %v1093
      %v2398 = vpop.f32.mrf.mxu0
      %v2399 = vadd.f32 %v2238, %v2398
      %v2400 = vpop.f32.mrf.mxu0
      %v2401 = vpop.f32.mrf.mxu0
      %v2402 = vadd.f32 %v2241, %v2401
      %v2403 = vpop.f32.mrf.mxu0
      %2404 = vmatprep.mubr.bf16.mxu0 0
      %2405 = vmatmul.mubr.bf16.gmra.mxu0 %v1094
      %v2406 = vpop.f32.mrf.mxu0
      %v2407 = vadd.f32 %v2246, %v2406
      %v2408 = vpop.f32.mrf.mxu0
      %v2409 = vpop.f32.mrf.mxu0
      %v2410 = vadd.f32 %v2249, %v2409
      %v2411 = vpop.f32.mrf.mxu0
      %2412 = vmatprep.mubr.bf16.mxu0 0
      %2413 = vmatmul.mubr.bf16.gmra.mxu0 %v1095
      %v2414 = vpop.f32.mrf.mxu0
      %v2415 = vadd.f32 %v2254, %v2414
      %v2416 = vpop.f32.mrf.mxu0
      %v2417 = vpop.f32.mrf.mxu0
      %v2418 = vadd.f32 %v2257, %v2417
      %v2419 = vpop.f32.mrf.mxu0
      %2420 = vmatprep.mubr.bf16.mxu0 0
      %2421 = vmatmul.mubr.bf16.gmra.mxu0 %v1096
      %v2422 = vpop.f32.mrf.mxu0
      %v2423 = vadd.f32 %v2262, %v2422
      %v2424 = vpop.f32.mrf.mxu0
      %v2425 = vpop.f32.mrf.mxu0
      %v2426 = vadd.f32 %v2265, %v2425
      %v2427 = vpop.f32.mrf.mxu0
      %2428 = vmatprep.mubr.bf16.mxu0 0
      %2429 = vmatmul.mubr.bf16.gmra.mxu0 %v1097
      %v2430 = vpop.f32.mrf.mxu0
      %v2431 = vadd.f32 %v2270, %v2430
      %v2432 = vpop.f32.mrf.mxu0
      %v2433 = vpop.f32.mrf.mxu0
      %v2434 = vadd.f32 %v2273, %v2433
      %v2435 = vpop.f32.mrf.mxu0
      %2436 = vmatprep.mubr.bf16.mxu0 0
      %2437 = vmatmul.mubr.bf16.gmra.mxu0 %v1098
      %v2438 = vpop.f32.mrf.mxu0
      %v2439 = vadd.f32 %v2278, %v2438
      %v2440 = vpop.f32.mrf.mxu0
      %v2441 = vpop.f32.mrf.mxu0
      %v2442 = vadd.f32 %v2281, %v2441
      %v2443 = vpop.f32.mrf.mxu0
      %2444 = vmatprep.mubr.bf16.mxu0 0
      %2445 = vmatmul.mubr.bf16.gmra.mxu0 %v1099
      %v2446 = vpop.f32.mrf.mxu0
      %v2447 = vadd.f32 %v2286, %v2446
      %v2448 = vpop.f32.mrf.mxu0
      %v2449 = vpop.f32.mrf.mxu0
      %v2450 = vadd.f32 %v2289, %v2449
      %v2451 = vpop.f32.mrf.mxu0
      %2452 = vmatprep.mubr.bf16.mxu0 0
      %2453 = vmatmul.mubr.bf16.gmra.mxu0 %v1100
      %v2454 = vpop.f32.mrf.mxu0
      %v2455 = vadd.f32 %v2294, %v2454
      %v2456 = vpop.f32.mrf.mxu0
      %v2457 = vpop.f32.mrf.mxu0
      %v2458 = vadd.f32 %v2297, %v2457
      %v2459 = vpop.f32.mrf.mxu0
      %2460 = vmatprep.mubr.bf16.mxu0 0
      %2461 = vmatmul.mubr.bf16.gmra.mxu0 %v1101
      %v2462 = vpop.f32.mrf.mxu0
      %v2463 = vadd.f32 %v2302, %v2462
      %v2464 = vpop.f32.mrf.mxu0
      %v2465 = vpop.f32.mrf.mxu0
      %v2466 = vadd.f32 %v2305, %v2465
      %v2467 = vpop.f32.mrf.mxu0
      %2468 = vmatprep.mubr.bf16.mxu0 0
      %2469 = vmatmul.mubr.bf16.gmra.mxu0 %v1102
      %v2470 = vpop.f32.mrf.mxu0
      %v2471 = vadd.f32 %v2310, %v2470
      %v2472 = vpop.f32.mrf.mxu0
      %v2473 = vpop.f32.mrf.mxu0
      %v2474 = vadd.f32 %v2313, %v2473
      %v2475 = vpop.f32.mrf.mxu0
      %2476 = vmatprep.mubr.bf16.mxu0 0
      %2477 = vmatmul.mubr.bf16.gmra.mxu0 %v1103
      %v2478 = vpop.f32.mrf.mxu0
      %v2479 = vadd.f32 %v2318, %v2478
      %v2480 = vpop.f32.mrf.mxu0
      %v2481 = vpop.f32.mrf.mxu0
      %v2482 = vadd.f32 %v2321, %v2481
      %v2483 = vpop.f32.mrf.mxu0
      %2484 = vmatprep.mubr.bf16.mxu0 0
      %2485 = vmatmul.mubr.bf16.gmra.mxu0 %v1104
      %v2486 = vpop.f32.mrf.mxu0
      %v2487 = vadd.f32 %v2326, %v2486
      %v2488 = vpop.f32.mrf.mxu0
      %v2489 = vpop.f32.mrf.mxu0
      %v2490 = vadd.f32 %v2329, %v2489
      %v2491 = vpop.f32.mrf.mxu0
      %2492 = vdwg.mxu0
      %v2493 = vmax.f32 %v2367, 0.0
      %v2494 = vmax.f32 %v2370, 0.0
      %v2495 = vmax.f32 %v2375, 0.0
      %v2496 = vmax.f32 %v2378, 0.0
      %v2497 = vmax.f32 %v2383, 0.0
      %v2498 = vmax.f32 %v2386, 0.0
      %v2499 = vmax.f32 %v2391, 0.0
      %v2500 = vmax.f32 %v2394, 0.0
      %v2501 = vmax.f32 %v2399, 0.0
      %v2502 = vmax.f32 %v2402, 0.0
      %v2503 = vmax.f32 %v2407, 0.0
      %v2504 = vmax.f32 %v2410, 0.0
      %v2505 = vmax.f32 %v2415, 0.0
      %v2506 = vmax.f32 %v2418, 0.0
      %v2507 = vmax.f32 %v2423, 0.0
      %v2508 = vmax.f32 %v2426, 0.0
      %v2509 = vmax.f32 %v2431, 0.0
      %v2510 = vmax.f32 %v2434, 0.0
      %v2511 = vmax.f32 %v2439, 0.0
      %v2512 = vmax.f32 %v2442, 0.0
      %v2513 = vmax.f32 %v2447, 0.0
      %v2514 = vmax.f32 %v2450, 0.0
      %v2515 = vmax.f32 %v2455, 0.0
      %v2516 = vmax.f32 %v2458, 0.0
      %v2517 = vmax.f32 %v2463, 0.0
      %v2518 = vmax.f32 %v2466, 0.0
      %v2519 = vmax.f32 %v2471, 0.0
      %v2520 = vmax.f32 %v2474, 0.0
      %v2521 = vmax.f32 %v2479, 0.0
      %v2522 = vmax.f32 %v2482, 0.0
      %v2523 = vmax.f32 %v2487, 0.0
      %v2524 = vmax.f32 %v2490, 0.0
      %v2525 = vpack.c.bf16 %v2494, %v2493
      %v2526 = vpack.c.bf16 %v2496, %v2495
      %v2527 = vpack.c.bf16 %v2498, %v2497
      %v2528 = vpack.c.bf16 %v2500, %v2499
      %v2529 = vpack.c.bf16 %v2502, %v2501
      %v2530 = vpack.c.bf16 %v2504, %v2503
      %v2531 = vpack.c.bf16 %v2506, %v2505
      %v2532 = vpack.c.bf16 %v2508, %v2507
      %v2533 = vpack.c.bf16 %v2510, %v2509
      %v2534 = vpack.c.bf16 %v2512, %v2511
      %v2535 = vpack.c.bf16 %v2514, %v2513
      %v2536 = vpack.c.bf16 %v2516, %v2515
      %v2537 = vpack.c.bf16 %v2518, %v2517
      %v2538 = vpack.c.bf16 %v2520, %v2519
      %v2539 = vpack.c.bf16 %v2522, %v2521
      %v2540 = vpack.c.bf16 %v2524, %v2523
      %v2541 = vld [vmem:[%s5] sm:$0xf]
      %v2542 = vld [vmem:[%s5 + $0x4] sm:$0xf]
      %v2543 = vld [vmem:[%s5 + $0x8] sm:$0xf]
      %v2544 = vld [vmem:[%s5 + $0xc] sm:$0xf]
      %v2545 = vld [vmem:[%s5 + $0x10] sm:$0xf]
      %v2546 = vld [vmem:[%s5 + $0x14] sm:$0xf]
      %v2547 = vld [vmem:[%s5 + $0x18] sm:$0xf]
      %v2548 = vld [vmem:[%s5 + $0x1c] sm:$0xf]
      %v2549 = vld [vmem:[%s5 + $0x20] sm:$0xf]
      %v2550 = vld [vmem:[%s5 + $0x24] sm:$0xf]
      %v2551 = vld [vmem:[%s5 + $0x28] sm:$0xf]
      %v2552 = vld [vmem:[%s5 + $0x2c] sm:$0xf]
      %v2553 = vld [vmem:[%s5 + $0x30] sm:$0xf]
      %v2554 = vld [vmem:[%s5 + $0x34] sm:$0xf]
      %v2555 = vld [vmem:[%s5 + $0x38] sm:$0xf]
      %v2556 = vld [vmem:[%s5 + $0x3c] sm:$0xf]
      %v2557 = vld [vmem:[%s6] sm:$0x1]
      %v2559 = vlaneseq
      %v2560 = vshrl.u32 %v2559, 7
      %v2561 = vsub.s32 0, %v2560
      %v2562 = vrot.slane %v2557, %v2561
      %v2580 = vunpack.c.l.b16 %v2541
      %v2581 = vunpack.c.l.b16 %v2542
      %v2582 = vunpack.c.l.b16 %v2543
      %v2583 = vunpack.c.l.b16 %v2544
      %v2584 = vunpack.c.l.b16 %v2545
      %v2585 = vunpack.c.l.b16 %v2546
      %v2586 = vunpack.c.l.b16 %v2547
      %v2587 = vunpack.c.l.b16 %v2548
      %v2588 = vunpack.c.l.b16 %v2549
      %v2589 = vunpack.c.l.b16 %v2550
      %v2590 = vunpack.c.l.b16 %v2551
      %v2591 = vunpack.c.l.b16 %v2552
      %v2592 = vunpack.c.l.b16 %v2553
      %v2593 = vunpack.c.l.b16 %v2554
      %v2594 = vunpack.c.l.b16 %v2555
      %v2595 = vunpack.c.l.b16 %v2556
      %v2596 = vpack.c.b16 %v2581, %v2580
      %v2597 = vpack.c.b16 %v2583, %v2582
      %v2598 = vpack.c.b16 %v2585, %v2584
      %v2599 = vpack.c.b16 %v2587, %v2586
      %v2600 = vpack.c.b16 %v2589, %v2588
      %v2601 = vpack.c.b16 %v2591, %v2590
      %v2602 = vpack.c.b16 %v2593, %v2592
      %v2603 = vpack.c.b16 %v2595, %v2594
      %2612 = vmatprep.subr.bf16.mxu0 0
      %2613 = vmatpush1.bf16.msra.mxu0 %v2603
      %2614 = vmatprep.subr.bf16.mxu0 0
      %2615 = vmatpush1.bf16.msra.mxu0 %v2602
      %2616 = vmatprep.subr.bf16.mxu0 0
      %2617 = vmatpush1.bf16.msra.mxu0 %v2601
      %2618 = vmatprep.subr.bf16.mxu0 0
      %2619 = vmatpush1.bf16.msra.mxu0 %v2600
      %2620 = vmatprep.subr.bf16.mxu0 0
      %2621 = vmatpush1.bf16.msra.mxu0 %v2599
      %2622 = vmatprep.subr.bf16.mxu0 0
      %2623 = vmatpush1.bf16.msra.mxu0 %v2598
      %2624 = vmatprep.subr.bf16.mxu0 0
      %2625 = vmatpush1.bf16.msra.mxu0 %v2597
      %2626 = vmatprep.subr.bf16.mxu0 0
      %2627 = vmatpush1.bf16.msra.mxu0 %v2596
      %2628 = vmatprep.subr.bf16.mxu0 0
      %2629 = vmatpush2.bf16.msra.mxu0 0
      %2630 = vmatprep.subr.bf16.mxu0 0
      %2631 = vmatpush2.bf16.msra.mxu0 0
      %2632 = vmatprep.subr.bf16.mxu0 0
      %2633 = vmatpush2.bf16.msra.mxu0 0
      %2634 = vmatprep.subr.bf16.mxu0 0
      %2635 = vmatpush2.bf16.msra.mxu0 0
      %2636 = vmatprep.subr.bf16.mxu0 0
      %2637 = vmatpush2.bf16.msra.mxu0 0
      %2638 = vmatprep.subr.bf16.mxu0 0
      %2639 = vmatpush2.bf16.msra.mxu0 0
      %2640 = vmatprep.subr.bf16.mxu0 0
      %2641 = vmatpush2.bf16.msra.mxu0 0
      %2642 = vmatprep.subr.bf16.mxu0 0
      %2643 = vmatpush2.bf16.msra.mxu0 0
      %2644 = vmatprep.mubr.bf16.mxu0 0
      %2645 = vmatmul.mubr.bf16.gmra.mxu0 %v2525
      %v2646 = vpop.f32.mrf.mxu0
      %v2647 = vadd.f32 %v2562, %v2646
      %v2648 = vpop.f32.mrf.mxu0
      %v2649 = vpop.f32.mrf.mxu0
      %v2650 = vadd.f32 %v2562, %v2649
      %v2651 = vpop.f32.mrf.mxu0
      %2652 = vmatprep.mubr.bf16.mxu0 0
      %2653 = vmatmul.mubr.bf16.gmra.mxu0 %v2526
      %v2654 = vpop.f32.mrf.mxu0
      %v2655 = vadd.f32 %v2562, %v2654
      %v2656 = vpop.f32.mrf.mxu0
      %v2657 = vpop.f32.mrf.mxu0
      %v2658 = vadd.f32 %v2562, %v2657
      %v2659 = vpop.f32.mrf.mxu0
      %2660 = vmatprep.mubr.bf16.mxu0 0
      %2661 = vmatmul.mubr.bf16.gmra.mxu0 %v2527
      %v2662 = vpop.f32.mrf.mxu0
      %v2663 = vadd.f32 %v2562, %v2662
      %v2664 = vpop.f32.mrf.mxu0
      %v2665 = vpop.f32.mrf.mxu0
      %v2666 = vadd.f32 %v2562, %v2665
      %v2667 = vpop.f32.mrf.mxu0
      %2668 = vmatprep.mubr.bf16.mxu0 0
      %2669 = vmatmul.mubr.bf16.gmra.mxu0 %v2528
      %v2670 = vpop.f32.mrf.mxu0
      %v2671 = vadd.f32 %v2562, %v2670
      %v2672 = vpop.f32.mrf.mxu0
      %v2673 = vpop.f32.mrf.mxu0
      %v2674 = vadd.f32 %v2562, %v2673
      %v2675 = vpop.f32.mrf.mxu0
      %2676 = vmatprep.mubr.bf16.mxu0 0
      %2677 = vmatmul.mubr.bf16.gmra.mxu0 %v2529
      %v2678 = vpop.f32.mrf.mxu0
      %v2679 = vadd.f32 %v2562, %v2678
      %v2680 = vpop.f32.mrf.mxu0
      %v2681 = vpop.f32.mrf.mxu0
      %v2682 = vadd.f32 %v2562, %v2681
      %v2683 = vpop.f32.mrf.mxu0
      %2684 = vmatprep.mubr.bf16.mxu0 0
      %2685 = vmatmul.mubr.bf16.gmra.mxu0 %v2530
      %v2686 = vpop.f32.mrf.mxu0
      %v2687 = vadd.f32 %v2562, %v2686
      %v2688 = vpop.f32.mrf.mxu0
      %v2689 = vpop.f32.mrf.mxu0
      %v2690 = vadd.f32 %v2562, %v2689
      %v2691 = vpop.f32.mrf.mxu0
      %2692 = vmatprep.mubr.bf16.mxu0 0
      %2693 = vmatmul.mubr.bf16.gmra.mxu0 %v2531
      %v2694 = vpop.f32.mrf.mxu0
      %v2695 = vadd.f32 %v2562, %v2694
      %v2696 = vpop.f32.mrf.mxu0
      %v2697 = vpop.f32.mrf.mxu0
      %v2698 = vadd.f32 %v2562, %v2697
      %v2699 = vpop.f32.mrf.mxu0
      %2700 = vmatprep.mubr.bf16.mxu0 0
      %2701 = vmatmul.mubr.bf16.gmra.mxu0 %v2532
      %v2702 = vpop.f32.mrf.mxu0
      %v2703 = vadd.f32 %v2562, %v2702
      %v2704 = vpop.f32.mrf.mxu0
      %v2705 = vpop.f32.mrf.mxu0
      %v2706 = vadd.f32 %v2562, %v2705
      %v2707 = vpop.f32.mrf.mxu0
      %2708 = vmatprep.mubr.bf16.mxu0 0
      %2709 = vmatmul.mubr.bf16.gmra.mxu0 %v2533
      %v2710 = vpop.f32.mrf.mxu0
      %v2711 = vadd.f32 %v2562, %v2710
      %v2712 = vpop.f32.mrf.mxu0
      %v2713 = vpop.f32.mrf.mxu0
      %v2714 = vadd.f32 %v2562, %v2713
      %v2715 = vpop.f32.mrf.mxu0
      %2716 = vmatprep.mubr.bf16.mxu0 0
      %2717 = vmatmul.mubr.bf16.gmra.mxu0 %v2534
      %v2718 = vpop.f32.mrf.mxu0
      %v2719 = vadd.f32 %v2562, %v2718
      %v2720 = vpop.f32.mrf.mxu0
      %v2721 = vpop.f32.mrf.mxu0
      %v2722 = vadd.f32 %v2562, %v2721
      %v2723 = vpop.f32.mrf.mxu0
      %2724 = vmatprep.mubr.bf16.mxu0 0
      %2725 = vmatmul.mubr.bf16.gmra.mxu0 %v2535
      %v2726 = vpop.f32.mrf.mxu0
      %v2727 = vadd.f32 %v2562, %v2726
      %v2728 = vpop.f32.mrf.mxu0
      %v2729 = vpop.f32.mrf.mxu0
      %v2730 = vadd.f32 %v2562, %v2729
      %v2731 = vpop.f32.mrf.mxu0
      %2732 = vmatprep.mubr.bf16.mxu0 0
      %2733 = vmatmul.mubr.bf16.gmra.mxu0 %v2536
      %v2734 = vpop.f32.mrf.mxu0
      %v2735 = vadd.f32 %v2562, %v2734
      %v2736 = vpop.f32.mrf.mxu0
      %v2737 = vpop.f32.mrf.mxu0
      %v2738 = vadd.f32 %v2562, %v2737
      %v2739 = vpop.f32.mrf.mxu0
      %2740 = vmatprep.mubr.bf16.mxu0 0
      %2741 = vmatmul.mubr.bf16.gmra.mxu0 %v2537
      %v2742 = vpop.f32.mrf.mxu0
      %v2743 = vadd.f32 %v2562, %v2742
      %v2744 = vpop.f32.mrf.mxu0
      %v2745 = vpop.f32.mrf.mxu0
      %v2746 = vadd.f32 %v2562, %v2745
      %v2747 = vpop.f32.mrf.mxu0
      %2748 = vmatprep.mubr.bf16.mxu0 0
      %2749 = vmatmul.mubr.bf16.gmra.mxu0 %v2538
      %v2750 = vpop.f32.mrf.mxu0
      %v2751 = vadd.f32 %v2562, %v2750
      %v2752 = vpop.f32.mrf.mxu0
      %v2753 = vpop.f32.mrf.mxu0
      %v2754 = vadd.f32 %v2562, %v2753
      %v2755 = vpop.f32.mrf.mxu0
      %2756 = vmatprep.mubr.bf16.mxu0 0
      %2757 = vmatmul.mubr.bf16.gmra.mxu0 %v2539
      %v2758 = vpop.f32.mrf.mxu0
      %v2759 = vadd.f32 %v2562, %v2758
      %v2760 = vpop.f32.mrf.mxu0
      %v2761 = vpop.f32.mrf.mxu0
      %v2762 = vadd.f32 %v2562, %v2761
      %v2763 = vpop.f32.mrf.mxu0
      %2764 = vmatprep.mubr.bf16.mxu0 0
      %2765 = vmatmul.mubr.bf16.gmra.mxu0 %v2540
      %v2766 = vpop.f32.mrf.mxu0
      %v2767 = vadd.f32 %v2562, %v2766
      %v2768 = vpop.f32.mrf.mxu0
      %v2769 = vpop.f32.mrf.mxu0
      %v2770 = vadd.f32 %v2562, %v2769
      %v2771 = vpop.f32.mrf.mxu0
      %2772 = vdwg.mxu0
      %s2773 = sadd.s32 %s305, 1
      %s2774 = smul.u32 %s2773, 2
      %s2775 = smul.addr %s2774, 4
      %s2776 = scalar_lea.vmem %s292, %s2775
      %v2777 = vld [vmem:[%s2776] sm:$0xf]
      %v2778 = vld [vmem:[%s2776 + $0x4] sm:$0xf]
      %v2779 = vld [vmem:[%s2776 + $0x8] sm:$0xf]
      %v2780 = vld [vmem:[%s2776 + $0xc] sm:$0xf]
      %v2781 = vld [vmem:[%s2776 + $0x10] sm:$0xf]
      %v2782 = vld [vmem:[%s2776 + $0x14] sm:$0xf]
      %v2783 = vld [vmem:[%s2776 + $0x18] sm:$0xf]
      %v2784 = vld [vmem:[%s2776 + $0x1c] sm:$0xf]
      %v2785 = vld [vmem:[%s2776 + $0x20] sm:$0xf]
      %v2786 = vld [vmem:[%s2776 + $0x24] sm:$0xf]
      %v2787 = vld [vmem:[%s2776 + $0x28] sm:$0xf]
      %v2788 = vld [vmem:[%s2776 + $0x2c] sm:$0xf]
      %v2789 = vld [vmem:[%s2776 + $0x30] sm:$0xf]
      %v2790 = vld [vmem:[%s2776 + $0x34] sm:$0xf]
      %v2791 = vld [vmem:[%s2776 + $0x38] sm:$0xf]
      %v2792 = vld [vmem:[%s2776 + $0x3c] sm:$0xf]
      %v2793 = vld [vmem:[%s2776 + $0x40] sm:$0xf]
      %v2794 = vld [vmem:[%s2776 + $0x44] sm:$0xf]
      %v2795 = vld [vmem:[%s2776 + $0x48] sm:$0xf]
      %v2796 = vld [vmem:[%s2776 + $0x4c] sm:$0xf]
      %v2797 = vld [vmem:[%s2776 + $0x50] sm:$0xf]
      %v2798 = vld [vmem:[%s2776 + $0x54] sm:$0xf]
      %v2799 = vld [vmem:[%s2776 + $0x58] sm:$0xf]
      %v2800 = vld [vmem:[%s2776 + $0x5c] sm:$0xf]
      %v2801 = vld [vmem:[%s2776 + $0x60] sm:$0xf]
      %v2802 = vld [vmem:[%s2776 + $0x64] sm:$0xf]
      %v2803 = vld [vmem:[%s2776 + $0x68] sm:$0xf]
      %v2804 = vld [vmem:[%s2776 + $0x6c] sm:$0xf]
      %v2805 = vld [vmem:[%s2776 + $0x70] sm:$0xf]
      %v2806 = vld [vmem:[%s2776 + $0x74] sm:$0xf]
      %v2807 = vld [vmem:[%s2776 + $0x78] sm:$0xf]
      %v2808 = vld [vmem:[%s2776 + $0x7c] sm:$0xf]
      %v2809 = vunpack.c.l.bf16 %v2777
      %v2810 = vunpack.c.l.bf16 %v2778
      %v2811 = vunpack.c.l.bf16 %v2779
      %v2812 = vunpack.c.l.bf16 %v2780
      %v2813 = vunpack.c.l.bf16 %v2781
      %v2814 = vunpack.c.l.bf16 %v2782
      %v2815 = vunpack.c.l.bf16 %v2783
      %v2816 = vunpack.c.l.bf16 %v2784
      %v2817 = vunpack.c.l.bf16 %v2785
      %v2818 = vunpack.c.l.bf16 %v2786
      %v2819 = vunpack.c.l.bf16 %v2787
      %v2820 = vunpack.c.l.bf16 %v2788
      %v2821 = vunpack.c.l.bf16 %v2789
      %v2822 = vunpack.c.l.bf16 %v2790
      %v2823 = vunpack.c.l.bf16 %v2791
      %v2824 = vunpack.c.l.bf16 %v2792
      %v2825 = vunpack.c.l.bf16 %v2793
      %v2826 = vunpack.c.l.bf16 %v2794
      %v2827 = vunpack.c.l.bf16 %v2795
      %v2828 = vunpack.c.l.bf16 %v2796
      %v2829 = vunpack.c.l.bf16 %v2797
      %v2830 = vunpack.c.l.bf16 %v2798
      %v2831 = vunpack.c.l.bf16 %v2799
      %v2832 = vunpack.c.l.bf16 %v2800
      %v2833 = vunpack.c.l.bf16 %v2801
      %v2834 = vunpack.c.l.bf16 %v2802
      %v2835 = vunpack.c.l.bf16 %v2803
      %v2836 = vunpack.c.l.bf16 %v2804
      %v2837 = vunpack.c.l.bf16 %v2805
      %v2838 = vunpack.c.l.bf16 %v2806
      %v2839 = vunpack.c.l.bf16 %v2807
      %v2840 = vunpack.c.l.bf16 %v2808
      %v2841 = vadd.f32 %v2647, %v2809
      %v2842 = vadd.f32 %v2650, %v2810
      %v2843 = vadd.f32 %v2655, %v2811
      %v2844 = vadd.f32 %v2658, %v2812
      %v2845 = vadd.f32 %v2663, %v2813
      %v2846 = vadd.f32 %v2666, %v2814
      %v2847 = vadd.f32 %v2671, %v2815
      %v2848 = vadd.f32 %v2674, %v2816
      %v2849 = vadd.f32 %v2679, %v2817
      %v2850 = vadd.f32 %v2682, %v2818
      %v2851 = vadd.f32 %v2687, %v2819
      %v2852 = vadd.f32 %v2690, %v2820
      %v2853 = vadd.f32 %v2695, %v2821
      %v2854 = vadd.f32 %v2698, %v2822
      %v2855 = vadd.f32 %v2703, %v2823
      %v2856 = vadd.f32 %v2706, %v2824
      %v2857 = vadd.f32 %v2711, %v2825
      %v2858 = vadd.f32 %v2714, %v2826
      %v2859 = vadd.f32 %v2719, %v2827
      %v2860 = vadd.f32 %v2722, %v2828
      %v2861 = vadd.f32 %v2727, %v2829
      %v2862 = vadd.f32 %v2730, %v2830
      %v2863 = vadd.f32 %v2735, %v2831
      %v2864 = vadd.f32 %v2738, %v2832
      %v2865 = vadd.f32 %v2743, %v2833
      %v2866 = vadd.f32 %v2746, %v2834
      %v2867 = vadd.f32 %v2751, %v2835
      %v2868 = vadd.f32 %v2754, %v2836
      %v2869 = vadd.f32 %v2759, %v2837
      %v2870 = vadd.f32 %v2762, %v2838
      %v2871 = vadd.f32 %v2767, %v2839
      %v2872 = vadd.f32 %v2770, %v2840
      %v2873 = vmax.f32 %v2841, 0.0
      %v2874 = vmax.f32 %v2842, 0.0
      %v2875 = vmax.f32 %v2843, 0.0
      %v2876 = vmax.f32 %v2844, 0.0
      %v2877 = vmax.f32 %v2845, 0.0
      %v2878 = vmax.f32 %v2846, 0.0
      %v2879 = vmax.f32 %v2847, 0.0
      %v2880 = vmax.f32 %v2848, 0.0
      %v2881 = vmax.f32 %v2849, 0.0
      %v2882 = vmax.f32 %v2850, 0.0
      %v2883 = vmax.f32 %v2851, 0.0
      %v2884 = vmax.f32 %v2852, 0.0
      %v2885 = vmax.f32 %v2853, 0.0
      %v2886 = vmax.f32 %v2854, 0.0
      %v2887 = vmax.f32 %v2855, 0.0
      %v2888 = vmax.f32 %v2856, 0.0
      %v2889 = vmax.f32 %v2857, 0.0
      %v2890 = vmax.f32 %v2858, 0.0
      %v2891 = vmax.f32 %v2859, 0.0
      %v2892 = vmax.f32 %v2860, 0.0
      %v2893 = vmax.f32 %v2861, 0.0
      %v2894 = vmax.f32 %v2862, 0.0
      %v2895 = vmax.f32 %v2863, 0.0
      %v2896 = vmax.f32 %v2864, 0.0
      %v2897 = vmax.f32 %v2865, 0.0
      %v2898 = vmax.f32 %v2866, 0.0
      %v2899 = vmax.f32 %v2867, 0.0
      %v2900 = vmax.f32 %v2868, 0.0
      %v2901 = vmax.f32 %v2869, 0.0
      %v2902 = vmax.f32 %v2870, 0.0
      %v2903 = vmax.f32 %v2871, 0.0
      %v2904 = vmax.f32 %v2872, 0.0
      %2905 = vst [vmem:[%s302] sm:$0xff] %v2873
      %2906 = vst [vmem:[%s302 + $0x8] sm:$0xff] %v2874
      %2907 = vst [vmem:[%s302 + $0x10] sm:$0xff] %v2875
      %2908 = vst [vmem:[%s302 + $0x18] sm:$0xff] %v2876
      %2909 = vst [vmem:[%s302 + $0x20] sm:$0xff] %v2877
      %2910 = vst [vmem:[%s302 + $0x28] sm:$0xff] %v2878
      %2911 = vst [vmem:[%s302 + $0x30] sm:$0xff] %v2879
      %2912 = vst [vmem:[%s302 + $0x38] sm:$0xff] %v2880
      %2913 = vst [vmem:[%s302 + $0x40] sm:$0xff] %v2881
      %2914 = vst [vmem:[%s302 + $0x48] sm:$0xff] %v2882
      %2915 = vst [vmem:[%s302 + $0x50] sm:$0xff] %v2883
      %2916 = vst [vmem:[%s302 + $0x58] sm:$0xff] %v2884
      %2917 = vst [vmem:[%s302 + $0x60] sm:$0xff] %v2885
      %2918 = vst [vmem:[%s302 + $0x68] sm:$0xff] %v2886
      %2919 = vst [vmem:[%s302 + $0x70] sm:$0xff] %v2887
      %2920 = vst [vmem:[%s302 + $0x78] sm:$0xff] %v2888
      %2921 = vst [vmem:[%s302 + $0x80] sm:$0xff] %v2889
      %2922 = vst [vmem:[%s302 + $0x88] sm:$0xff] %v2890
      %2923 = vst [vmem:[%s302 + $0x90] sm:$0xff] %v2891
      %2924 = vst [vmem:[%s302 + $0x98] sm:$0xff] %v2892
      %2925 = vst [vmem:[%s302 + $0xa0] sm:$0xff] %v2893
      %2926 = vst [vmem:[%s302 + $0xa8] sm:$0xff] %v2894
      %2927 = vst [vmem:[%s302 + $0xb0] sm:$0xff] %v2895
      %2928 = vst [vmem:[%s302 + $0xb8] sm:$0xff] %v2896
      %2929 = vst [vmem:[%s302 + $0xc0] sm:$0xff] %v2897
      %2930 = vst [vmem:[%s302 + $0xc8] sm:$0xff] %v2898
      %2931 = vst [vmem:[%s302 + $0xd0] sm:$0xff] %v2899
      %2932 = vst [vmem:[%s302 + $0xd8] sm:$0xff] %v2900
      %2933 = vst [vmem:[%s302 + $0xe0] sm:$0xff] %v2901
      %2934 = vst [vmem:[%s302 + $0xe8] sm:$0xff] %v2902
      %2935 = vst [vmem:[%s302 + $0xf0] sm:$0xff] %v2903
      %2936 = vst [vmem:[%s302 + $0xf8] sm:$0xff] %v2904
      %s2937 = smul.u32 16, %s23
      %p2938 = scmp.lt.s32.totalorder %s22, 1
      %s2939 = scalar_select %p2938, %s22, 1
      %p2940 = scmp.lt.s32.totalorder %s2937, 15
      %s2941 = scalar_select %p2940, %s2937, 15
      %s2942 = smul.addr %s2941, 2
      %s2943 = smul.addr %s2939, 32
      %s2944 = sadd.s32 %s2942, %s2943
      %s2945 = smul.addr %s2944, 8
      %s2946 = scalar_lea.vmem %s7, %s2945
      // Predicated region
      $region53: #{_bottleneck_pallas_impl.1} parent=47 // pred_check
        %p2947 = pneg %p202
      $region54: #{_bottleneck_pallas_impl.1} parent=47 // pred_check_branch
        %2949 = sbr.rel (%p2947) target = $region56
      $region55: #{_bottleneck_pallas_impl.1} parent=47 // pred_region
        %s2950 = smul.u32 16, %s23
      $region56: #{_bottleneck_pallas_impl.1} parent=47 // pred_fallthru
        _
    $region48: #{_bottleneck_pallas_impl.1} parent=5 // pred_fallthru
      _
    %p2951 = scmp.le.s32.totalorder 2, %s13
    // Predicated region
    $region57: #{_bottleneck_pallas_impl.1} parent=5 // pred_check
      %p2952 = pneg %p2951
    $region58: #{_bottleneck_pallas_impl.1} parent=5 // pred_check_branch
      %2954 = sbr.rel (%p2952) target = $region60
    $region59: #{_bottleneck_pallas_impl.1} parent=5 // pred_region
      %s2955 = ssub.s32 %s13, 2
      // Predicated region
      $region61: #{_bottleneck_pallas_impl.1} parent=59 // pred_check
        %p2956 = pneg %p208
      $region62: #{_bottleneck_pallas_impl.1} parent=59 // pred_check_branch
        %2958 = sbr.rel (%p2956) target = $region64
      $region63: #{_bottleneck_pallas_impl.1} parent=59 // pred_region
        %s2959 = smul.u32 16, %s25
        %p2960 = scmp.lt.s32.totalorder %s24, 1
        %s2961 = scalar_select %p2960, %s24, 1
        %p2962 = scmp.lt.s32.totalorder %s2959, 15
        %s2963 = scalar_select %p2962, %s2959, 15
        %s2964 = smul.addr %s2963, 2
        %s2965 = smul.addr %s2961, 32
        %s2966 = sadd.s32 %s2964, %s2965
        %s2967 = smul.addr %s2966, 8
        %s2968 = scalar_lea.vmem %s7, %s2967
      $region64: #{_bottleneck_pallas_impl.1} parent=59 // pred_fallthru
        _
    $region60: #{_bottleneck_pallas_impl.1} parent=5 // pred_fallthru
      _
  $region6: #{_bottleneck_pallas_impl.1} parent=0 // loop_footer
    %s17 = sadd.s32 1, %s13
  $region7: #{_bottleneck_pallas_impl.1} parent=0 // loop_footer_branch
    %12 = sbr.rel target = $region3
  $region8: #{_bottleneck_pallas_impl.1} parent=0 // loop_exit
    _

</llo_original>
